<compile_context>
chip_gen: v7x
topology: tpu7x:2x2x1
jax: 0.10.0
libtpu: 0.0.40
codegen_flags: <defaults>
</compile_context>

<pallas_src>
import functools

import jax
import jax.numpy as jnp
from jax.experimental import pallas as pl
from jax.experimental.pallas import tpu as pltpu


def _conv_kernel(x_ref, w_ref, b_ref, o_ref, *, n, kh, kw, wp, lp, dilation):
    # x_ref: (N, C, LP)        flattened, zero-padded input (LP = lane-padded Hp*Wp)
    # w_ref: (KH*KW, O, C)     per-tap weight matrices, tap index t = i*KW + j
    # b_ref: (O, 1)            bias (broadcast over the lane axis)
    # o_ref: (N, O, LP)        lane-dense output slab on the padded frame
    for b in range(n):                       # static unroll over the small batch
        x = x_ref[b]                         # (C, LP)
        acc = None
        for i in range(kh):                  # KH, KW are small static ints
            for j in range(kw):
                off = i * dilation * wp + j * dilation
                # xs[c, p] = x[c, p + off]  (np.roll by -off; only positions that
                # are never valid outputs read wrapped/zero-pad data).
                xs = x if off == 0 else pltpu.roll(x, shift=(lp - off) % lp, axis=1)
                w_tap = w_ref[i * kw + j]    # (O, C)
                part = jnp.dot(w_tap, xs, preferred_element_type=jnp.float32)
                acc = part if acc is None else acc + part
        acc = acc + b_ref[...]               # (O, 1) broadcast over LP lanes
        o_ref[b] = acc.astype(o_ref.dtype)


def conv2d_pallas(x_nchw, weight_ockk, bias_o, *, stride=1, padding=0, dilation=1):
    """Matches torch.nn.Conv2d(in, out, k, stride, padding, dilation, bias=True)."""
    n, c, h, w = x_nchw.shape
    o, c2, kh, kw = weight_ockk.shape
    assert c == c2

    oh = (h + 2 * padding - dilation * (kh - 1) - 1) // stride + 1
    ow = (w + 2 * padding - dilation * (kw - 1) - 1) // stride + 1
    hp, wp = h + 2 * padding, w + 2 * padding
    lp = ((hp * wp + 127) // 128) * 128      # lane-pad to a multiple of 128

    # --- wrapper glue: tiny XLA ops only, no full-tensor transposes ---
    x_pad = jnp.pad(
        x_nchw, ((0, 0), (0, 0), (padding, padding), (padding, padding)))
    x_flat = x_pad.reshape(n, c, hp * wp)                      # contiguous -> free
    x_flat = jnp.pad(x_flat, ((0, 0), (0, 0), (0, lp - hp * wp)))

    # (O, C, KH, KW) -> (KH*KW, O, C): per-tap weight matrices; tiny tensor.
    w_taps = jnp.transpose(weight_ockk, (2, 3, 0, 1)).reshape(kh * kw, o, c)
    b2d = bias_o.reshape(o, 1)

    kernel = functools.partial(
        _conv_kernel, n=n, kh=kh, kw=kw, wp=wp, lp=lp, dilation=dilation)

    flops = 2 * n * lp * c * o * kh * kw
    bytes_accessed = 4 * (x_flat.size + w_taps.size + b2d.size + n * o * lp)

    out_flat = pl.pallas_call(
        kernel,
        out_shape=jax.ShapeDtypeStruct((n, o, lp), x_nchw.dtype),
        grid_spec=pltpu.PrefetchScalarGridSpec(
            num_scalar_prefetch=0,
            grid=(1,),                                          # batch folded: 1 step
            in_specs=[
                pl.BlockSpec((n, c, lp), lambda i: (0, 0, 0)),
                pl.BlockSpec((kh * kw, o, c), lambda i: (0, 0, 0)),
                pl.BlockSpec((o, 1), lambda i: (0, 0)),
            ],
            out_specs=pl.BlockSpec((n, o, lp), lambda i: (0, 0, 0)),
        ),
        compiler_params=pltpu.CompilerParams(
            dimension_semantics=("arbitrary",)),
        cost_estimate=pl.CostEstimate(
            flops=flops, transcendentals=0, bytes_accessed=bytes_accessed),
    )(x_flat, w_taps, b2d)

    # Valid-region extraction (and stride handling) on a ~KB-sized tensor in XLA:
    # out[n, o, oh, ow] lives at padded-frame position (oh*stride, ow*stride).
    out_full = out_flat[:, :, :hp * wp].reshape(n, o, hp, wp)
    out = out_full[:, :,
                   0:(oh - 1) * stride + 1:stride,
                   0:(ow - 1) * stride + 1:stride]
    return out


if __name__ == "__main__":
    # Module config: conv(in_channel=4, out_channel=8, kernel_size=3, padding=1)
    in_channel, out_channel, kernel_size = 4, 8, 3
    padding, stride, dilation = 1, 1, 1
    batch, spatial = 2, 16

    key = jax.random.PRNGKey(0)
    kx, kw_, kb = jax.random.split(key, 3)

    x = jax.random.normal(kx, (batch, in_channel, spatial, spatial), dtype=jnp.float32)
    # Deterministic synthetic parameters (shapes per nn.Conv2d): (O, C, KH, KW), (O,)
    fan_in = in_channel * kernel_size * kernel_size
    bound = 1.0 / (fan_in ** 0.5)
    weight = jax.random.uniform(
        kw_, (out_channel, in_channel, kernel_size, kernel_size),
        minval=-bound, maxval=bound, dtype=jnp.float32)
    bias = jax.random.uniform(kb, (out_channel,), minval=-bound, maxval=bound,
                              dtype=jnp.float32)

    out = conv2d_pallas(x, weight, bias, stride=stride, padding=padding,
                        dilation=dilation)
    out = jax.block_until_ready(out)

    # Cross-check against XLA's conv (same semantics as torch Conv2d).
    ref = jax.lax.conv_general_dilated(
        x, weight, window_strides=(stride, stride),
        padding=((padding, padding), (padding, padding)),
        rhs_dilation=(dilation, dilation),
        dimension_numbers=("NCHW", "OIHW", "NCHW"),
    ) + bias.reshape(1, out_channel, 1, 1)
    assert out.shape == (batch, out_channel, spatial, spatial)
    assert jnp.allclose(out, ref, atol=1e-4, rtol=1e-4)

    print("KERNEL_OK")
</pallas_src>

<mosaic_0001>
module attributes {stable_mosaic.version = 11 : i64} {
  func.func @_conv_kernel(%arg0: i32, %arg1: memref<2x4x384xf32, #tpu.memory_space<vmem>>, %arg2: memref<9x8x4xf32, #tpu.memory_space<vmem>>, %arg3: memref<8x1xf32, #tpu.memory_space<vmem>>, %arg4: memref<2x8x384xf32, #tpu.memory_space<vmem>>) attributes {dimension_semantics = [#tpu.dimension_semantics<arbitrary>], iteration_bounds = array<i64: 1>, scalar_prefetch = 0 : i64, scratch_operands = 0 : i64, tpu.core_type = #tpu.core_type<tc>, window_params = [{pipeline_mode = #tpu.pipeline_mode<synchronous>, transform_indices = @transform_0, window_bounds = array<i64: 2, 4, 384>}, {pipeline_mode = #tpu.pipeline_mode<synchronous>, transform_indices = @transform_1, window_bounds = array<i64: 9, 8, 4>}, {pipeline_mode = #tpu.pipeline_mode<synchronous>, transform_indices = @transform_2, window_bounds = array<i64: 8, 1>}, {pipeline_mode = #tpu.pipeline_mode<synchronous>, transform_indices = @transform_3, window_bounds = array<i64: 2, 8, 384>}]} {
    %c0 = arith.constant 0 : index
    %c0_0 = arith.constant 0 : index
    %c0_1 = arith.constant 0 : index
    %0 = vector.load %arg1[%c0, %c0_0, %c0_1] : memref<2x4x384xf32, #tpu.memory_space<vmem>>, vector<1x4x384xf32>
    %1 = vector.shape_cast %0 : vector<1x4x384xf32> to vector<4x384xf32>
    %c0_2 = arith.constant 0 : index
    %c0_3 = arith.constant 0 : index
    %c0_4 = arith.constant 0 : index
    %2 = vector.load %arg2[%c0_2, %c0_3, %c0_4] : memref<9x8x4xf32, #tpu.memory_space<vmem>>, vector<1x8x4xf32>
    %3 = vector.shape_cast %2 : vector<1x8x4xf32> to vector<8x4xf32>
    %cst = arith.constant dense<0.000000e+00> : vector<8x384xf32>
    %4 = tpu.matmul %3, %1, %cst {dimension_numbers = #tpu.dot_dimension_numbers<[1], [0], [0], [1], [0, 0, 1, 1], [], []>} : vector<8x4xf32>, vector<4x384xf32>, vector<8x384xf32> -> vector<8x384xf32>
    %c383_i32 = arith.constant 383 : i32
    %5 = tpu.dynamic_rotate %1 by %c383_i32 dim 1 : vector<4x384xf32>, i32 -> vector<4x384xf32>
    %c1 = arith.constant 1 : index
    %c0_5 = arith.constant 0 : index
    %c0_6 = arith.constant 0 : index
    %6 = vector.load %arg2[%c1, %c0_5, %c0_6] : memref<9x8x4xf32, #tpu.memory_space<vmem>>, vector<1x8x4xf32>
    %7 = vector.shape_cast %6 : vector<1x8x4xf32> to vector<8x4xf32>
    %cst_7 = arith.constant dense<0.000000e+00> : vector<8x384xf32>
    %8 = tpu.matmul %7, %5, %cst_7 {dimension_numbers = #tpu.dot_dimension_numbers<[1], [0], [0], [1], [0, 0, 1, 1], [], []>} : vector<8x4xf32>, vector<4x384xf32>, vector<8x384xf32> -> vector<8x384xf32>
    %9 = arith.addf %4, %8 : vector<8x384xf32>
    %c382_i32 = arith.constant 382 : i32
    %10 = tpu.dynamic_rotate %1 by %c382_i32 dim 1 : vector<4x384xf32>, i32 -> vector<4x384xf32>
    %c2 = arith.constant 2 : index
    %c0_8 = arith.constant 0 : index
    %c0_9 = arith.constant 0 : index
    %11 = vector.load %arg2[%c2, %c0_8, %c0_9] : memref<9x8x4xf32, #tpu.memory_space<vmem>>, vector<1x8x4xf32>
    %12 = vector.shape_cast %11 : vector<1x8x4xf32> to vector<8x4xf32>
    %cst_10 = arith.constant dense<0.000000e+00> : vector<8x384xf32>
    %13 = tpu.matmul %12, %10, %cst_10 {dimension_numbers = #tpu.dot_dimension_numbers<[1], [0], [0], [1], [0, 0, 1, 1], [], []>} : vector<8x4xf32>, vector<4x384xf32>, vector<8x384xf32> -> vector<8x384xf32>
    %14 = arith.addf %9, %13 : vector<8x384xf32>
    %c366_i32 = arith.constant 366 : i32
    %15 = tpu.dynamic_rotate %1 by %c366_i32 dim 1 : vector<4x384xf32>, i32 -> vector<4x384xf32>
    %c3 = arith.constant 3 : index
    %c0_11 = arith.constant 0 : index
    %c0_12 = arith.constant 0 : index
    %16 = vector.load %arg2[%c3, %c0_11, %c0_12] : memref<9x8x4xf32, #tpu.memory_space<vmem>>, vector<1x8x4xf32>
    %17 = vector.shape_cast %16 : vector<1x8x4xf32> to vector<8x4xf32>
    %cst_13 = arith.constant dense<0.000000e+00> : vector<8x384xf32>
    %18 = tpu.matmul %17, %15, %cst_13 {dimension_numbers = #tpu.dot_dimension_numbers<[1], [0], [0], [1], [0, 0, 1, 1], [], []>} : vector<8x4xf32>, vector<4x384xf32>, vector<8x384xf32> -> vector<8x384xf32>
    %19 = arith.addf %14, %18 : vector<8x384xf32>
    %c365_i32 = arith.constant 365 : i32
    %20 = tpu.dynamic_rotate %1 by %c365_i32 dim 1 : vector<4x384xf32>, i32 -> vector<4x384xf32>
    %c4 = arith.constant 4 : index
    %c0_14 = arith.constant 0 : index
    %c0_15 = arith.constant 0 : index
    %21 = vector.load %arg2[%c4, %c0_14, %c0_15] : memref<9x8x4xf32, #tpu.memory_space<vmem>>, vector<1x8x4xf32>
    %22 = vector.shape_cast %21 : vector<1x8x4xf32> to vector<8x4xf32>
    %cst_16 = arith.constant dense<0.000000e+00> : vector<8x384xf32>
    %23 = tpu.matmul %22, %20, %cst_16 {dimension_numbers = #tpu.dot_dimension_numbers<[1], [0], [0], [1], [0, 0, 1, 1], [], []>} : vector<8x4xf32>, vector<4x384xf32>, vector<8x384xf32> -> vector<8x384xf32>
    %24 = arith.addf %19, %23 : vector<8x384xf32>
    %c364_i32 = arith.constant 364 : i32
    %25 = tpu.dynamic_rotate %1 by %c364_i32 dim 1 : vector<4x384xf32>, i32 -> vector<4x384xf32>
    %c5 = arith.constant 5 : index
    %c0_17 = arith.constant 0 : index
    %c0_18 = arith.constant 0 : index
    %26 = vector.load %arg2[%c5, %c0_17, %c0_18] : memref<9x8x4xf32, #tpu.memory_space<vmem>>, vector<1x8x4xf32>
    %27 = vector.shape_cast %26 : vector<1x8x4xf32> to vector<8x4xf32>
    %cst_19 = arith.constant dense<0.000000e+00> : vector<8x384xf32>
    %28 = tpu.matmul %27, %25, %cst_19 {dimension_numbers = #tpu.dot_dimension_numbers<[1], [0], [0], [1], [0, 0, 1, 1], [], []>} : vector<8x4xf32>, vector<4x384xf32>, vector<8x384xf32> -> vector<8x384xf32>
    %29 = arith.addf %24, %28 : vector<8x384xf32>
    %c348_i32 = arith.constant 348 : i32
    %30 = tpu.dynamic_rotate %1 by %c348_i32 dim 1 : vector<4x384xf32>, i32 -> vector<4x384xf32>
    %c6 = arith.constant 6 : index
    %c0_20 = arith.constant 0 : index
    %c0_21 = arith.constant 0 : index
    %31 = vector.load %arg2[%c6, %c0_20, %c0_21] : memref<9x8x4xf32, #tpu.memory_space<vmem>>, vector<1x8x4xf32>
    %32 = vector.shape_cast %31 : vector<1x8x4xf32> to vector<8x4xf32>
    %cst_22 = arith.constant dense<0.000000e+00> : vector<8x384xf32>
    %33 = tpu.matmul %32, %30, %cst_22 {dimension_numbers = #tpu.dot_dimension_numbers<[1], [0], [0], [1], [0, 0, 1, 1], [], []>} : vector<8x4xf32>, vector<4x384xf32>, vector<8x384xf32> -> vector<8x384xf32>
    %34 = arith.addf %29, %33 : vector<8x384xf32>
    %c347_i32 = arith.constant 347 : i32
    %35 = tpu.dynamic_rotate %1 by %c347_i32 dim 1 : vector<4x384xf32>, i32 -> vector<4x384xf32>
    %c7 = arith.constant 7 : index
    %c0_23 = arith.constant 0 : index
    %c0_24 = arith.constant 0 : index
    %36 = vector.load %arg2[%c7, %c0_23, %c0_24] : memref<9x8x4xf32, #tpu.memory_space<vmem>>, vector<1x8x4xf32>
    %37 = vector.shape_cast %36 : vector<1x8x4xf32> to vector<8x4xf32>
    %cst_25 = arith.constant dense<0.000000e+00> : vector<8x384xf32>
    %38 = tpu.matmul %37, %35, %cst_25 {dimension_numbers = #tpu.dot_dimension_numbers<[1], [0], [0], [1], [0, 0, 1, 1], [], []>} : vector<8x4xf32>, vector<4x384xf32>, vector<8x384xf32> -> vector<8x384xf32>
    %39 = arith.addf %34, %38 : vector<8x384xf32>
    %c346_i32 = arith.constant 346 : i32
    %40 = tpu.dynamic_rotate %1 by %c346_i32 dim 1 : vector<4x384xf32>, i32 -> vector<4x384xf32>
    %c8 = arith.constant 8 : index
    %c0_26 = arith.constant 0 : index
    %c0_27 = arith.constant 0 : index
    %41 = vector.load %arg2[%c8, %c0_26, %c0_27] : memref<9x8x4xf32, #tpu.memory_space<vmem>>, vector<1x8x4xf32>
    %42 = vector.shape_cast %41 : vector<1x8x4xf32> to vector<8x4xf32>
    %cst_28 = arith.constant dense<0.000000e+00> : vector<8x384xf32>
    %43 = tpu.matmul %42, %40, %cst_28 {dimension_numbers = #tpu.dot_dimension_numbers<[1], [0], [0], [1], [0, 0, 1, 1], [], []>} : vector<8x4xf32>, vector<4x384xf32>, vector<8x384xf32> -> vector<8x384xf32>
    %44 = arith.addf %39, %43 : vector<8x384xf32>
    %c0_29 = arith.constant 0 : index
    %c0_30 = arith.constant 0 : index
    %45 = vector.load %arg3[%c0_29, %c0_30] : memref<8x1xf32, #tpu.memory_space<vmem>>, vector<8x1xf32>
    %46 = vector.broadcast %45 : vector<8x1xf32> to vector<8x384xf32>
    %47 = arith.addf %44, %46 : vector<8x384xf32>
    %c0_31 = arith.constant 0 : index
    %c0_32 = arith.constant 0 : index
    %c0_33 = arith.constant 0 : index
    %48 = vector.load %arg4[%c0_31, %c0_32, %c0_33] : memref<2x8x384xf32, #tpu.memory_space<vmem>>, vector<1x8x384xf32>
    %49 = vector.shape_cast %48 : vector<1x8x384xf32> to vector<8x384xf32>
    %50 = vector.shape_cast %47 : vector<8x384xf32> to vector<1x8x384xf32>
    tpu.vector_store %arg4[%c0_31, %c0_32, %c0_33], %50 {strides = array<i32>} : memref<2x8x384xf32, #tpu.memory_space<vmem>>, vector<1x8x384xf32>,
    %c1_34 = arith.constant 1 : index
    %c0_35 = arith.constant 0 : index
    %c0_36 = arith.constant 0 : index
    %51 = vector.load %arg1[%c1_34, %c0_35, %c0_36] : memref<2x4x384xf32, #tpu.memory_space<vmem>>, vector<1x4x384xf32>
    %52 = vector.shape_cast %51 : vector<1x4x384xf32> to vector<4x384xf32>
    %c0_37 = arith.constant 0 : index
    %c0_38 = arith.constant 0 : index
    %c0_39 = arith.constant 0 : index
    %53 = vector.load %arg2[%c0_37, %c0_38, %c0_39] : memref<9x8x4xf32, #tpu.memory_space<vmem>>, vector<1x8x4xf32>
    %54 = vector.shape_cast %53 : vector<1x8x4xf32> to vector<8x4xf32>
    %cst_40 = arith.constant dense<0.000000e+00> : vector<8x384xf32>
    %55 = tpu.matmul %54, %52, %cst_40 {dimension_numbers = #tpu.dot_dimension_numbers<[1], [0], [0], [1], [0, 0, 1, 1], [], []>} : vector<8x4xf32>, vector<4x384xf32>, vector<8x384xf32> -> vector<8x384xf32>
    %c383_i32_41 = arith.constant 383 : i32
    %56 = tpu.dynamic_rotate %52 by %c383_i32_41 dim 1 : vector<4x384xf32>, i32 -> vector<4x384xf32>
    %c1_42 = arith.constant 1 : index
    %c0_43 = arith.constant 0 : index
    %c0_44 = arith.constant 0 : index
    %57 = vector.load %arg2[%c1_42, %c0_43, %c0_44] : memref<9x8x4xf32, #tpu.memory_space<vmem>>, vector<1x8x4xf32>
    %58 = vector.shape_cast %57 : vector<1x8x4xf32> to vector<8x4xf32>
    %cst_45 = arith.constant dense<0.000000e+00> : vector<8x384xf32>
    %59 = tpu.matmul %58, %56, %cst_45 {dimension_numbers = #tpu.dot_dimension_numbers<[1], [0], [0], [1], [0, 0, 1, 1], [], []>} : vector<8x4xf32>, vector<4x384xf32>, vector<8x384xf32> -> vector<8x384xf32>
    %60 = arith.addf %55, %59 : vector<8x384xf32>
    %c382_i32_46 = arith.constant 382 : i32
    %61 = tpu.dynamic_rotate %52 by %c382_i32_46 dim 1 : vector<4x384xf32>, i32 -> vector<4x384xf32>
    %c2_47 = arith.constant 2 : index
    %c0_48 = arith.constant 0 : index
    %c0_49 = arith.constant 0 : index
    %62 = vector.load %arg2[%c2_47, %c0_48, %c0_49] : memref<9x8x4xf32, #tpu.memory_space<vmem>>, vector<1x8x4xf32>
    %63 = vector.shape_cast %62 : vector<1x8x4xf32> to vector<8x4xf32>
    %cst_50 = arith.constant dense<0.000000e+00> : vector<8x384xf32>
    %64 = tpu.matmul %63, %61, %cst_50 {dimension_numbers = #tpu.dot_dimension_numbers<[1], [0], [0], [1], [0, 0, 1, 1], [], []>} : vector<8x4xf32>, vector<4x384xf32>, vector<8x384xf32> -> vector<8x384xf32>
    %65 = arith.addf %60, %64 : vector<8x384xf32>
    %c366_i32_51 = arith.constant 366 : i32
    %66 = tpu.dynamic_rotate %52 by %c366_i32_51 dim 1 : vector<4x384xf32>, i32 -> vector<4x384xf32>
    %c3_52 = arith.constant 3 : index
    %c0_53 = arith.constant 0 : index
    %c0_54 = arith.constant 0 : index
    %67 = vector.load %arg2[%c3_52, %c0_53, %c0_54] : memref<9x8x4xf32, #tpu.memory_space<vmem>>, vector<1x8x4xf32>
    %68 = vector.shape_cast %67 : vector<1x8x4xf32> to vector<8x4xf32>
    %cst_55 = arith.constant dense<0.000000e+00> : vector<8x384xf32>
    %69 = tpu.matmul %68, %66, %cst_55 {dimension_numbers = #tpu.dot_dimension_numbers<[1], [0], [0], [1], [0, 0, 1, 1], [], []>} : vector<8x4xf32>, vector<4x384xf32>, vector<8x384xf32> -> vector<8x384xf32>
    %70 = arith.addf %65, %69 : vector<8x384xf32>
    %c365_i32_56 = arith.constant 365 : i32
    %71 = tpu.dynamic_rotate %52 by %c365_i32_56 dim 1 : vector<4x384xf32>, i32 -> vector<4x384xf32>
    %c4_57 = arith.constant 4 : index
    %c0_58 = arith.constant 0 : index
    %c0_59 = arith.constant 0 : index
    %72 = vector.load %arg2[%c4_57, %c0_58, %c0_59] : memref<9x8x4xf32, #tpu.memory_space<vmem>>, vector<1x8x4xf32>
    %73 = vector.shape_cast %72 : vector<1x8x4xf32> to vector<8x4xf32>
    %cst_60 = arith.constant dense<0.000000e+00> : vector<8x384xf32>
    %74 = tpu.matmul %73, %71, %cst_60 {dimension_numbers = #tpu.dot_dimension_numbers<[1], [0], [0], [1], [0, 0, 1, 1], [], []>} : vector<8x4xf32>, vector<4x384xf32>, vector<8x384xf32> -> vector<8x384xf32>
    %75 = arith.addf %70, %74 : vector<8x384xf32>
    %c364_i32_61 = arith.constant 364 : i32
    %76 = tpu.dynamic_rotate %52 by %c364_i32_61 dim 1 : vector<4x384xf32>, i32 -> vector<4x384xf32>
    %c5_62 = arith.constant 5 : index
    %c0_63 = arith.constant 0 : index
    %c0_64 = arith.constant 0 : index
    %77 = vector.load %arg2[%c5_62, %c0_63, %c0_64] : memref<9x8x4xf32, #tpu.memory_space<vmem>>, vector<1x8x4xf32>
    %78 = vector.shape_cast %77 : vector<1x8x4xf32> to vector<8x4xf32>
    %cst_65 = arith.constant dense<0.000000e+00> : vector<8x384xf32>
    %79 = tpu.matmul %78, %76, %cst_65 {dimension_numbers = #tpu.dot_dimension_numbers<[1], [0], [0], [1], [0, 0, 1, 1], [], []>} : vector<8x4xf32>, vector<4x384xf32>, vector<8x384xf32> -> vector<8x384xf32>
    %80 = arith.addf %75, %79 : vector<8x384xf32>
    %c348_i32_66 = arith.constant 348 : i32
    %81 = tpu.dynamic_rotate %52 by %c348_i32_66 dim 1 : vector<4x384xf32>, i32 -> vector<4x384xf32>
    %c6_67 = arith.constant 6 : index
    %c0_68 = arith.constant 0 : index
    %c0_69 = arith.constant 0 : index
    %82 = vector.load %arg2[%c6_67, %c0_68, %c0_69] : memref<9x8x4xf32, #tpu.memory_space<vmem>>, vector<1x8x4xf32>
    %83 = vector.shape_cast %82 : vector<1x8x4xf32> to vector<8x4xf32>
    %cst_70 = arith.constant dense<0.000000e+00> : vector<8x384xf32>
    %84 = tpu.matmul %83, %81, %cst_70 {dimension_numbers = #tpu.dot_dimension_numbers<[1], [0], [0], [1], [0, 0, 1, 1], [], []>} : vector<8x4xf32>, vector<4x384xf32>, vector<8x384xf32> -> vector<8x384xf32>
    %85 = arith.addf %80, %84 : vector<8x384xf32>
    %c347_i32_71 = arith.constant 347 : i32
    %86 = tpu.dynamic_rotate %52 by %c347_i32_71 dim 1 : vector<4x384xf32>, i32 -> vector<4x384xf32>
    %c7_72 = arith.constant 7 : index
    %c0_73 = arith.constant 0 : index
    %c0_74 = arith.constant 0 : index
    %87 = vector.load %arg2[%c7_72, %c0_73, %c0_74] : memref<9x8x4xf32, #tpu.memory_space<vmem>>, vector<1x8x4xf32>
    %88 = vector.shape_cast %87 : vector<1x8x4xf32> to vector<8x4xf32>
    %cst_75 = arith.constant dense<0.000000e+00> : vector<8x384xf32>
    %89 = tpu.matmul %88, %86, %cst_75 {dimension_numbers = #tpu.dot_dimension_numbers<[1], [0], [0], [1], [0, 0, 1, 1], [], []>} : vector<8x4xf32>, vector<4x384xf32>, vector<8x384xf32> -> vector<8x384xf32>
    %90 = arith.addf %85, %89 : vector<8x384xf32>
    %c346_i32_76 = arith.constant 346 : i32
    %91 = tpu.dynamic_rotate %52 by %c346_i32_76 dim 1 : vector<4x384xf32>, i32 -> vector<4x384xf32>
    %c8_77 = arith.constant 8 : index
    %c0_78 = arith.constant 0 : index
    %c0_79 = arith.constant 0 : index
    %92 = vector.load %arg2[%c8_77, %c0_78, %c0_79] : memref<9x8x4xf32, #tpu.memory_space<vmem>>, vector<1x8x4xf32>
    %93 = vector.shape_cast %92 : vector<1x8x4xf32> to vector<8x4xf32>
    %cst_80 = arith.constant dense<0.000000e+00> : vector<8x384xf32>
    %94 = tpu.matmul %93, %91, %cst_80 {dimension_numbers = #tpu.dot_dimension_numbers<[1], [0], [0], [1], [0, 0, 1, 1], [], []>} : vector<8x4xf32>, vector<4x384xf32>, vector<8x384xf32> -> vector<8x384xf32>
    %95 = arith.addf %90, %94 : vector<8x384xf32>
    %c0_81 = arith.constant 0 : index
    %c0_82 = arith.constant 0 : index
    %96 = vector.load %arg3[%c0_81, %c0_82] : memref<8x1xf32, #tpu.memory_space<vmem>>, vector<8x1xf32>
    %97 = vector.broadcast %96 : vector<8x1xf32> to vector<8x384xf32>
    %98 = arith.addf %95, %97 : vector<8x384xf32>
    %c1_83 = arith.constant 1 : index
    %c0_84 = arith.constant 0 : index
    %c0_85 = arith.constant 0 : index
    %99 = vector.load %arg4[%c1_83, %c0_84, %c0_85] : memref<2x8x384xf32, #tpu.memory_space<vmem>>, vector<1x8x384xf32>
    %100 = vector.shape_cast %99 : vector<1x8x384xf32> to vector<8x384xf32>
    %101 = vector.shape_cast %98 : vector<8x384xf32> to vector<1x8x384xf32>
    tpu.vector_store %arg4[%c1_83, %c0_84, %c0_85], %101 {strides = array<i32>} : memref<2x8x384xf32, #tpu.memory_space<vmem>>, vector<1x8x384xf32>,
    return
  }
  func.func @transform_0(%arg0: i32) -> (i32, i32, i32) {
    %c0_i32 = arith.constant 0 : i32
    %c0_i32_0 = arith.constant 0 : i32
    %c0_i32_1 = arith.constant 0 : i32
    %c0_i32_2 = arith.constant 0 : i32
    return %c0_i32, %c0_i32_0, %c0_i32_1 : i32, i32, i32
  }
  func.func @transform_1(%arg0: i32) -> (i32, i32, i32) {
    %c0_i32 = arith.constant 0 : i32
    %c0_i32_0 = arith.constant 0 : i32
    %c0_i32_1 = arith.constant 0 : i32
    %c0_i32_2 = arith.constant 0 : i32
    return %c0_i32, %c0_i32_0, %c0_i32_1 : i32, i32, i32
  }
  func.func @transform_2(%arg0: i32) -> (i32, i32) {
    %c0_i32 = arith.constant 0 : i32
    %c0_i32_0 = arith.constant 0 : i32
    %c0_i32_1 = arith.constant 0 : i32
    return %c0_i32, %c0_i32_0 : i32, i32
  }
  func.func @transform_3(%arg0: i32) -> (i32, i32, i32) {
    %c0_i32 = arith.constant 0 : i32
    %c0_i32_0 = arith.constant 0 : i32
    %c0_i32_1 = arith.constant 0 : i32
    %c0_i32_2 = arith.constant 0 : i32
    return %c0_i32, %c0_i32_0, %c0_i32_1 : i32, i32, i32
  }
}

</mosaic_0001>

<llo_original>
// kernel: tpu_custom_call.1
$region0: #{tpu_custom_call.1}
  #allocation0 [shape = 'u32[]', space=smem, size = 0x4, offset = 0x4, fixed_abs, tag = 'smem constant byte address 0x4 - core index']
  #allocation1 [shape = 'u32[144,128]{1,0:T(1,128)}', space=vmem, size = 0x12000, scoped, tag = 'internal scratch']
  %s0 = inlined_call_operand.vmem [shape: f32[2,4,384], index: 0, kind: input, shape index: {}]
  %s1 = inlined_call_operand.vmem [shape: f32[9,8,4], index: 1, kind: input, shape index: {}]
  %s2 = inlined_call_operand.vmem [shape: f32[8,1], index: 2, kind: input, shape index: {}]
  %s3 = inlined_call_operand.hbm [shape: f32[2,8,384], index: 3, kind: output, shape index: {}]
  %s4 = sld [smem:[#allocation0]]
  $region22: #{tpu_custom_call.1} parent=0
    _
  %s6 = ssub.s32 1, %s4
  %s7 = scalar_select 0, %s6, %s4
  $region1: #{tpu_custom_call.1} parent=0
    #allocation2 [shape = 'u8[24576]{0}', space=vmem, size = 0x6000, scoped, tag = 'output window, operand 0, single buffered']
    #allocation3 [shape = 's32[1]{0}', space=sflag, size = 0x4, scoped, tag = 'scoped memory for tpu_custom_call.1']
    %8 = vsyncpa [#allocation3], 0
    // Predicated region
    $region2: #{tpu_custom_call.1} parent=1 // pred_check
      _
    $region3: #{tpu_custom_call.1} parent=1 // pred_check_branch
      %10 = sbr.rel (0) target = $region5
    $region4: #{tpu_custom_call.1} parent=1 // pred_region
      _
    $region5: #{tpu_custom_call.1} parent=1 // pred_fallthru
      _
    // Predicated region
    $region6: #{tpu_custom_call.1} parent=1 // pred_check
      _
    $region7: #{tpu_custom_call.1} parent=1 // pred_check_branch
      %12 = sbr.rel (0) target = $region9
    $region8: #{tpu_custom_call.1} parent=1 // pred_region
      _
    $region9: #{tpu_custom_call.1} parent=1 // pred_fallthru
      _
    // Predicated region
    $region10: #{tpu_custom_call.1} parent=1 // pred_check
      _
    $region11: #{tpu_custom_call.1} parent=1 // pred_check_branch
      %14 = sbr.rel (0) target = $region13
    $region12: #{tpu_custom_call.1} parent=1 // pred_region
      _
    $region13: #{tpu_custom_call.1} parent=1 // pred_fallthru
      _
    %v15 = vld [vmem:[%s0] sm:$0xff]
    %v16 = vld [vmem:[%s0 + $0x8] sm:$0xf]
    %v17 = vld [vmem:[%s1] sm:$0xff]
    %v20 = vcombine.high %v15, %v15
    %22 = vrot.lane.b32.xlu0 %v15, 127
    %v23 = vpop.permute.xlu0 %22
    %24 = vrot.lane.b32.xlu0 %v20, 127
    %v25 = vpop.permute.xlu0 %24
    %26 = vrot.lane.b32.xlu0 %v16, 127
    %v27 = vpop.permute.xlu0 %26
    %v28 = vlaneseq
    %v29 = vand.u32 %v28, 127
    %vm30 = vcmp.lt.s32.totalorder %v29, 127
    %v31 = vsel %vm30, %v25, %v27
    %v32 = vsel %vm30, %v23, %v25
    %v33 = vsel %vm30, %v27, %v23
    %s34 = scalar_lea.vmem %s1, 8
    %v35 = vld [vmem:[%s34] sm:$0xff]
    %vm36 = vcmask 31744
    %v38 = vsel %vm36, %v35, 0
    %vm40 = vcmask 1043456
    %v42 = vsel %vm40, %v32, 0
    %v45 = vsel %vm40, %v31, 0
    %v48 = vsel %vm40, %v33, 0
    %50 = vmatprep.subr.mxu0 %v45
    %51 = vmatpush1.msra.mxu0 %v42
    %52 = vmatprep.subr.mxu0 0.0
    %53 = vmatpush1.msra.mxu0 0.0
    %54 = vmatprep.subr.mxu0 0.0
    %55 = vmatpush1.msra.mxu0 0.0
    %56 = vmatprep.subr.mxu0 0.0
    %57 = vmatpush1.msra.mxu0 0.0
    %58 = vmatprep.subr.mxu0 0.0
    %59 = vmatpush1.msra.mxu0 0.0
    %60 = vmatprep.subr.mxu0 0.0
    %61 = vmatpush1.msra.mxu0 0.0
    %62 = vmatprep.subr.mxu0 0.0
    %63 = vmatpush1.msra.mxu0 0.0
    %64 = vmatprep.subr.mxu0 0.0
    %65 = vmatpush1.msra.mxu0 0.0
    %66 = vmatprep.subr.mxu0 0.0
    %67 = vmatpush1.msra.mxu0 0.0
    %68 = vmatprep.subr.mxu0 0.0
    %69 = vmatpush1.msra.mxu0 0.0
    %70 = vmatprep.subr.mxu0 0.0
    %71 = vmatpush1.msra.mxu0 0.0
    %72 = vmatprep.subr.mxu0 0.0
    %73 = vmatpush1.msra.mxu0 0.0
    %74 = vmatprep.subr.mxu0 0.0
    %75 = vmatpush1.msra.mxu0 0.0
    %76 = vmatprep.subr.mxu0 0.0
    %77 = vmatpush1.msra.mxu0 0.0
    %78 = vmatprep.subr.mxu0 0.0
    %79 = vmatpush1.msra.mxu0 0.0
    %80 = vmatprep.subr.mxu0 0.0
    %81 = vmatpush1.msra.mxu0 0.0
    %82 = vmatprep.subr.mxu0 0.0
    %83 = vmatpush1.msra.mxu0 0.0
    %84 = vmatprep.subr.mxu0 0.0
    %85 = vmatpush1.msra.mxu0 0.0
    %86 = vmatprep.subr.mxu0 0.0
    %87 = vmatpush1.msra.mxu0 0.0
    %88 = vmatprep.subr.mxu0 0.0
    %89 = vmatpush1.msra.mxu0 0.0
    %90 = vmatprep.subr.mxu0 0.0
    %91 = vmatpush1.msra.mxu0 0.0
    %92 = vmatprep.subr.mxu0 0.0
    %93 = vmatpush1.msra.mxu0 0.0
    %94 = vmatprep.subr.mxu0 0.0
    %95 = vmatpush1.msra.mxu0 0.0
    %96 = vmatprep.subr.mxu0 0.0
    %97 = vmatpush1.msra.mxu0 0.0
    %98 = vmatprep.subr.mxu0 0.0
    %99 = vmatpush1.msra.mxu0 0.0
    %100 = vmatprep.subr.mxu0 0.0
    %101 = vmatpush1.msra.mxu0 0.0
    %102 = vmatprep.subr.mxu0 0.0
    %103 = vmatpush1.msra.mxu0 0.0
    %104 = vmatprep.subr.mxu0 0.0
    %105 = vmatpush1.msra.mxu0 0.0
    %106 = vmatprep.subr.mxu0 0.0
    %107 = vmatpush1.msra.mxu0 0.0
    %108 = vmatprep.subr.mxu0 0.0
    %109 = vmatpush1.msra.mxu0 0.0
    %110 = vmatprep.subr.mxu0 0.0
    %111 = vmatpush1.msra.mxu0 0.0
    %112 = vmatprep.subr.mxu0 0.0
    %113 = vmatpush1.msra.mxu0 0.0
    %114 = vmatprep.mubr.f32.mxu0 0.0
    %115 = vmatmul.mubr.f32.gmra.mrb[0].mxu0 %v38
    %v116 = vpop.f32.mrb[0].mxu0
    %v117 = vadd.f32 0.0, %v116
    %v118 = vpop.f32.mrb[0].mxu0
    %v119 = vadd.f32 0.0, %v118
    %120 = vdwg.mxu0
    %121 = vmatprep.subr.mxu0 0.0
    %122 = vmatpush1.msra.mxu0 %v48
    %123 = vmatprep.subr.mxu0 0.0
    %124 = vmatpush1.msra.mxu0 0.0
    %125 = vmatprep.subr.mxu0 0.0
    %126 = vmatpush1.msra.mxu0 0.0
    %127 = vmatprep.subr.mxu0 0.0
    %128 = vmatpush1.msra.mxu0 0.0
    %129 = vmatprep.subr.mxu0 0.0
    %130 = vmatpush1.msra.mxu0 0.0
    %131 = vmatprep.subr.mxu0 0.0
    %132 = vmatpush1.msra.mxu0 0.0
    %133 = vmatprep.subr.mxu0 0.0
    %134 = vmatpush1.msra.mxu0 0.0
    %135 = vmatprep.subr.mxu0 0.0
    %136 = vmatpush1.msra.mxu0 0.0
    %137 = vmatprep.subr.mxu0 0.0
    %138 = vmatpush1.msra.mxu0 0.0
    %139 = vmatprep.subr.mxu0 0.0
    %140 = vmatpush1.msra.mxu0 0.0
    %141 = vmatprep.subr.mxu0 0.0
    %142 = vmatpush1.msra.mxu0 0.0
    %143 = vmatprep.subr.mxu0 0.0
    %144 = vmatpush1.msra.mxu0 0.0
    %145 = vmatprep.subr.mxu0 0.0
    %146 = vmatpush1.msra.mxu0 0.0
    %147 = vmatprep.subr.mxu0 0.0
    %148 = vmatpush1.msra.mxu0 0.0
    %149 = vmatprep.subr.mxu0 0.0
    %150 = vmatpush1.msra.mxu0 0.0
    %151 = vmatprep.subr.mxu0 0.0
    %152 = vmatpush1.msra.mxu0 0.0
    %153 = vmatprep.subr.mxu0 0.0
    %154 = vmatpush1.msra.mxu0 0.0
    %155 = vmatprep.subr.mxu0 0.0
    %156 = vmatpush1.msra.mxu0 0.0
    %157 = vmatprep.subr.mxu0 0.0
    %158 = vmatpush1.msra.mxu0 0.0
    %159 = vmatprep.subr.mxu0 0.0
    %160 = vmatpush1.msra.mxu0 0.0
    %161 = vmatprep.subr.mxu0 0.0
    %162 = vmatpush1.msra.mxu0 0.0
    %163 = vmatprep.subr.mxu0 0.0
    %164 = vmatpush1.msra.mxu0 0.0
    %165 = vmatprep.subr.mxu0 0.0
    %166 = vmatpush1.msra.mxu0 0.0
    %167 = vmatprep.subr.mxu0 0.0
    %168 = vmatpush1.msra.mxu0 0.0
    %169 = vmatprep.subr.mxu0 0.0
    %170 = vmatpush1.msra.mxu0 0.0
    %171 = vmatprep.subr.mxu0 0.0
    %172 = vmatpush1.msra.mxu0 0.0
    %173 = vmatprep.subr.mxu0 0.0
    %174 = vmatpush1.msra.mxu0 0.0
    %175 = vmatprep.subr.mxu0 0.0
    %176 = vmatpush1.msra.mxu0 0.0
    %177 = vmatprep.subr.mxu0 0.0
    %178 = vmatpush1.msra.mxu0 0.0
    %179 = vmatprep.subr.mxu0 0.0
    %180 = vmatpush1.msra.mxu0 0.0
    %181 = vmatprep.subr.mxu0 0.0
    %182 = vmatpush1.msra.mxu0 0.0
    %183 = vmatprep.subr.mxu0 0.0
    %184 = vmatpush1.msra.mxu0 0.0
    %185 = vmatprep.mubr.f32.mxu0 0.0
    %186 = vmatmul.mubr.f32.gmra.mrb[0].mxu0 %v38
    %v187 = vpop.f32.mrb[0].mxu0
    %v188 = vadd.f32 0.0, %v187
    %v189 = vpop.f32.mrb[0].mxu0
    %190 = vdwg.mxu0
    %v192 = vsel %vm36, %v17, 0
    %v194 = vsel %vm40, %v15, 0
    %v196 = vsel %vm40, %v20, 0
    %v198 = vsel %vm40, %v16, 0
    %200 = vmatprep.subr.mxu0 %v196
    %201 = vmatpush1.msra.mxu0 %v194
    %202 = vmatprep.subr.mxu0 0.0
    %203 = vmatpush1.msra.mxu0 0.0
    %204 = vmatprep.subr.mxu0 0.0
    %205 = vmatpush1.msra.mxu0 0.0
    %206 = vmatprep.subr.mxu0 0.0
    %207 = vmatpush1.msra.mxu0 0.0
    %208 = vmatprep.subr.mxu0 0.0
    %209 = vmatpush1.msra.mxu0 0.0
    %210 = vmatprep.subr.mxu0 0.0
    %211 = vmatpush1.msra.mxu0 0.0
    %212 = vmatprep.subr.mxu0 0.0
    %213 = vmatpush1.msra.mxu0 0.0
    %214 = vmatprep.subr.mxu0 0.0
    %215 = vmatpush1.msra.mxu0 0.0
    %216 = vmatprep.subr.mxu0 0.0
    %217 = vmatpush1.msra.mxu0 0.0
    %218 = vmatprep.subr.mxu0 0.0
    %219 = vmatpush1.msra.mxu0 0.0
    %220 = vmatprep.subr.mxu0 0.0
    %221 = vmatpush1.msra.mxu0 0.0
    %222 = vmatprep.subr.mxu0 0.0
    %223 = vmatpush1.msra.mxu0 0.0
    %224 = vmatprep.subr.mxu0 0.0
    %225 = vmatpush1.msra.mxu0 0.0
    %226 = vmatprep.subr.mxu0 0.0
    %227 = vmatpush1.msra.mxu0 0.0
    %228 = vmatprep.subr.mxu0 0.0
    %229 = vmatpush1.msra.mxu0 0.0
    %230 = vmatprep.subr.mxu0 0.0
    %231 = vmatpush1.msra.mxu0 0.0
    %232 = vmatprep.subr.mxu0 0.0
    %233 = vmatpush1.msra.mxu0 0.0
    %234 = vmatprep.subr.mxu0 0.0
    %235 = vmatpush1.msra.mxu0 0.0
    %236 = vmatprep.subr.mxu0 0.0
    %237 = vmatpush1.msra.mxu0 0.0
    %238 = vmatprep.subr.mxu0 0.0
    %239 = vmatpush1.msra.mxu0 0.0
    %240 = vmatprep.subr.mxu0 0.0
    %241 = vmatpush1.msra.mxu0 0.0
    %242 = vmatprep.subr.mxu0 0.0
    %243 = vmatpush1.msra.mxu0 0.0
    %244 = vmatprep.subr.mxu0 0.0
    %245 = vmatpush1.msra.mxu0 0.0
    %246 = vmatprep.subr.mxu0 0.0
    %247 = vmatpush1.msra.mxu0 0.0
    %248 = vmatprep.subr.mxu0 0.0
    %249 = vmatpush1.msra.mxu0 0.0
    %250 = vmatprep.subr.mxu0 0.0
    %251 = vmatpush1.msra.mxu0 0.0
    %252 = vmatprep.subr.mxu0 0.0
    %253 = vmatpush1.msra.mxu0 0.0
    %254 = vmatprep.subr.mxu0 0.0
    %255 = vmatpush1.msra.mxu0 0.0
    %256 = vmatprep.subr.mxu0 0.0
    %257 = vmatpush1.msra.mxu0 0.0
    %258 = vmatprep.subr.mxu0 0.0
    %259 = vmatpush1.msra.mxu0 0.0
    %260 = vmatprep.subr.mxu0 0.0
    %261 = vmatpush1.msra.mxu0 0.0
    %262 = vmatprep.subr.mxu0 0.0
    %263 = vmatpush1.msra.mxu0 0.0
    %264 = vmatprep.mubr.f32.mxu0 0.0
    %265 = vmatmul.mubr.f32.gmra.mrb[0].mxu0 %v192
    %v266 = vpop.f32.mrb[0].mxu0
    %v267 = vadd.f32 %v117, %v266
    %v268 = vpop.f32.mrb[0].mxu0
    %v269 = vadd.f32 %v119, %v268
    %270 = vdwg.mxu0
    %271 = vmatprep.subr.mxu0 0.0
    %272 = vmatpush1.msra.mxu0 %v198
    %273 = vmatprep.subr.mxu0 0.0
    %274 = vmatpush1.msra.mxu0 0.0
    %275 = vmatprep.subr.mxu0 0.0
    %276 = vmatpush1.msra.mxu0 0.0
    %277 = vmatprep.subr.mxu0 0.0
    %278 = vmatpush1.msra.mxu0 0.0
    %279 = vmatprep.subr.mxu0 0.0
    %280 = vmatpush1.msra.mxu0 0.0
    %281 = vmatprep.subr.mxu0 0.0
    %282 = vmatpush1.msra.mxu0 0.0
    %283 = vmatprep.subr.mxu0 0.0
    %284 = vmatpush1.msra.mxu0 0.0
    %285 = vmatprep.subr.mxu0 0.0
    %286 = vmatpush1.msra.mxu0 0.0
    %287 = vmatprep.subr.mxu0 0.0
    %288 = vmatpush1.msra.mxu0 0.0
    %289 = vmatprep.subr.mxu0 0.0
    %290 = vmatpush1.msra.mxu0 0.0
    %291 = vmatprep.subr.mxu0 0.0
    %292 = vmatpush1.msra.mxu0 0.0
    %293 = vmatprep.subr.mxu0 0.0
    %294 = vmatpush1.msra.mxu0 0.0
    %295 = vmatprep.subr.mxu0 0.0
    %296 = vmatpush1.msra.mxu0 0.0
    %297 = vmatprep.subr.mxu0 0.0
    %298 = vmatpush1.msra.mxu0 0.0
    %299 = vmatprep.subr.mxu0 0.0
    %300 = vmatpush1.msra.mxu0 0.0
    %301 = vmatprep.subr.mxu0 0.0
    %302 = vmatpush1.msra.mxu0 0.0
    %303 = vmatprep.subr.mxu0 0.0
    %304 = vmatpush1.msra.mxu0 0.0
    %305 = vmatprep.subr.mxu0 0.0
    %306 = vmatpush1.msra.mxu0 0.0
    %307 = vmatprep.subr.mxu0 0.0
    %308 = vmatpush1.msra.mxu0 0.0
    %309 = vmatprep.subr.mxu0 0.0
    %310 = vmatpush1.msra.mxu0 0.0
    %311 = vmatprep.subr.mxu0 0.0
    %312 = vmatpush1.msra.mxu0 0.0
    %313 = vmatprep.subr.mxu0 0.0
    %314 = vmatpush1.msra.mxu0 0.0
    %315 = vmatprep.subr.mxu0 0.0
    %316 = vmatpush1.msra.mxu0 0.0
    %317 = vmatprep.subr.mxu0 0.0
    %318 = vmatpush1.msra.mxu0 0.0
    %319 = vmatprep.subr.mxu0 0.0
    %320 = vmatpush1.msra.mxu0 0.0
    %321 = vmatprep.subr.mxu0 0.0
    %322 = vmatpush1.msra.mxu0 0.0
    %323 = vmatprep.subr.mxu0 0.0
    %324 = vmatpush1.msra.mxu0 0.0
    %325 = vmatprep.subr.mxu0 0.0
    %326 = vmatpush1.msra.mxu0 0.0
    %327 = vmatprep.subr.mxu0 0.0
    %328 = vmatpush1.msra.mxu0 0.0
    %329 = vmatprep.subr.mxu0 0.0
    %330 = vmatpush1.msra.mxu0 0.0
    %331 = vmatprep.subr.mxu0 0.0
    %332 = vmatpush1.msra.mxu0 0.0
    %333 = vmatprep.subr.mxu0 0.0
    %334 = vmatpush1.msra.mxu0 0.0
    %335 = vmatprep.mubr.f32.mxu0 0.0
    %336 = vmatmul.mubr.f32.gmra.mrb[0].mxu0 %v192
    %v337 = vpop.f32.mrb[0].mxu0
    %v338 = vadd.f32 %v188, %v337
    %v339 = vpop.f32.mrb[0].mxu0
    %340 = vdwg.mxu0
    %341 = vrot.lane.b32.xlu0 %v15, 126
    %v342 = vpop.permute.xlu0 %341
    %343 = vrot.lane.b32.xlu0 %v20, 126
    %v344 = vpop.permute.xlu0 %343
    %345 = vrot.lane.b32.xlu0 %v16, 126
    %v346 = vpop.permute.xlu0 %345
    %vm347 = vcmp.lt.s32.totalorder %v29, 126
    %v348 = vsel %vm347, %v344, %v346
    %v349 = vsel %vm347, %v342, %v344
    %v350 = vsel %vm347, %v346, %v342
    %s351 = scalar_lea.vmem %s1, 16
    %v352 = vld [vmem:[%s351] sm:$0xff]
    %v354 = vsel %vm36, %v352, 0
    %v357 = vsel %vm40, %v349, 0
    %v360 = vsel %vm40, %v348, 0
    %v363 = vsel %vm40, %v350, 0
    %365 = vmatprep.subr.mxu0 %v360
    %366 = vmatpush1.msra.mxu0 %v357
    %367 = vmatprep.subr.mxu0 0.0
    %368 = vmatpush1.msra.mxu0 0.0
    %369 = vmatprep.subr.mxu0 0.0
    %370 = vmatpush1.msra.mxu0 0.0
    %371 = vmatprep.subr.mxu0 0.0
    %372 = vmatpush1.msra.mxu0 0.0
    %373 = vmatprep.subr.mxu0 0.0
    %374 = vmatpush1.msra.mxu0 0.0
    %375 = vmatprep.subr.mxu0 0.0
    %376 = vmatpush1.msra.mxu0 0.0
    %377 = vmatprep.subr.mxu0 0.0
    %378 = vmatpush1.msra.mxu0 0.0
    %379 = vmatprep.subr.mxu0 0.0
    %380 = vmatpush1.msra.mxu0 0.0
    %381 = vmatprep.subr.mxu0 0.0
    %382 = vmatpush1.msra.mxu0 0.0
    %383 = vmatprep.subr.mxu0 0.0
    %384 = vmatpush1.msra.mxu0 0.0
    %385 = vmatprep.subr.mxu0 0.0
    %386 = vmatpush1.msra.mxu0 0.0
    %387 = vmatprep.subr.mxu0 0.0
    %388 = vmatpush1.msra.mxu0 0.0
    %389 = vmatprep.subr.mxu0 0.0
    %390 = vmatpush1.msra.mxu0 0.0
    %391 = vmatprep.subr.mxu0 0.0
    %392 = vmatpush1.msra.mxu0 0.0
    %393 = vmatprep.subr.mxu0 0.0
    %394 = vmatpush1.msra.mxu0 0.0
    %395 = vmatprep.subr.mxu0 0.0
    %396 = vmatpush1.msra.mxu0 0.0
    %397 = vmatprep.subr.mxu0 0.0
    %398 = vmatpush1.msra.mxu0 0.0
    %399 = vmatprep.subr.mxu0 0.0
    %400 = vmatpush1.msra.mxu0 0.0
    %401 = vmatprep.subr.mxu0 0.0
    %402 = vmatpush1.msra.mxu0 0.0
    %403 = vmatprep.subr.mxu0 0.0
    %404 = vmatpush1.msra.mxu0 0.0
    %405 = vmatprep.subr.mxu0 0.0
    %406 = vmatpush1.msra.mxu0 0.0
    %407 = vmatprep.subr.mxu0 0.0
    %408 = vmatpush1.msra.mxu0 0.0
    %409 = vmatprep.subr.mxu0 0.0
    %410 = vmatpush1.msra.mxu0 0.0
    %411 = vmatprep.subr.mxu0 0.0
    %412 = vmatpush1.msra.mxu0 0.0
    %413 = vmatprep.subr.mxu0 0.0
    %414 = vmatpush1.msra.mxu0 0.0
    %415 = vmatprep.subr.mxu0 0.0
    %416 = vmatpush1.msra.mxu0 0.0
    %417 = vmatprep.subr.mxu0 0.0
    %418 = vmatpush1.msra.mxu0 0.0
    %419 = vmatprep.subr.mxu0 0.0
    %420 = vmatpush1.msra.mxu0 0.0
    %421 = vmatprep.subr.mxu0 0.0
    %422 = vmatpush1.msra.mxu0 0.0
    %423 = vmatprep.subr.mxu0 0.0
    %424 = vmatpush1.msra.mxu0 0.0
    %425 = vmatprep.subr.mxu0 0.0
    %426 = vmatpush1.msra.mxu0 0.0
    %427 = vmatprep.subr.mxu0 0.0
    %428 = vmatpush1.msra.mxu0 0.0
    %429 = vmatprep.mubr.f32.mxu0 0.0
    %430 = vmatmul.mubr.f32.gmra.mrb[0].mxu0 %v354
    %v431 = vpop.f32.mrb[0].mxu0
    %v432 = vadd.f32 0.0, %v431
    %v433 = vpop.f32.mrb[0].mxu0
    %v434 = vadd.f32 0.0, %v433
    %435 = vdwg.mxu0
    %436 = vmatprep.subr.mxu0 0.0
    %437 = vmatpush1.msra.mxu0 %v363
    %438 = vmatprep.subr.mxu0 0.0
    %439 = vmatpush1.msra.mxu0 0.0
    %440 = vmatprep.subr.mxu0 0.0
    %441 = vmatpush1.msra.mxu0 0.0
    %442 = vmatprep.subr.mxu0 0.0
    %443 = vmatpush1.msra.mxu0 0.0
    %444 = vmatprep.subr.mxu0 0.0
    %445 = vmatpush1.msra.mxu0 0.0
    %446 = vmatprep.subr.mxu0 0.0
    %447 = vmatpush1.msra.mxu0 0.0
    %448 = vmatprep.subr.mxu0 0.0
    %449 = vmatpush1.msra.mxu0 0.0
    %450 = vmatprep.subr.mxu0 0.0
    %451 = vmatpush1.msra.mxu0 0.0
    %452 = vmatprep.subr.mxu0 0.0
    %453 = vmatpush1.msra.mxu0 0.0
    %454 = vmatprep.subr.mxu0 0.0
    %455 = vmatpush1.msra.mxu0 0.0
    %456 = vmatprep.subr.mxu0 0.0
    %457 = vmatpush1.msra.mxu0 0.0
    %458 = vmatprep.subr.mxu0 0.0
    %459 = vmatpush1.msra.mxu0 0.0
    %460 = vmatprep.subr.mxu0 0.0
    %461 = vmatpush1.msra.mxu0 0.0
    %462 = vmatprep.subr.mxu0 0.0
    %463 = vmatpush1.msra.mxu0 0.0
    %464 = vmatprep.subr.mxu0 0.0
    %465 = vmatpush1.msra.mxu0 0.0
    %466 = vmatprep.subr.mxu0 0.0
    %467 = vmatpush1.msra.mxu0 0.0
    %468 = vmatprep.subr.mxu0 0.0
    %469 = vmatpush1.msra.mxu0 0.0
    %470 = vmatprep.subr.mxu0 0.0
    %471 = vmatpush1.msra.mxu0 0.0
    %472 = vmatprep.subr.mxu0 0.0
    %473 = vmatpush1.msra.mxu0 0.0
    %474 = vmatprep.subr.mxu0 0.0
    %475 = vmatpush1.msra.mxu0 0.0
    %476 = vmatprep.subr.mxu0 0.0
    %477 = vmatpush1.msra.mxu0 0.0
    %478 = vmatprep.subr.mxu0 0.0
    %479 = vmatpush1.msra.mxu0 0.0
    %480 = vmatprep.subr.mxu0 0.0
    %481 = vmatpush1.msra.mxu0 0.0
    %482 = vmatprep.subr.mxu0 0.0
    %483 = vmatpush1.msra.mxu0 0.0
    %484 = vmatprep.subr.mxu0 0.0
    %485 = vmatpush1.msra.mxu0 0.0
    %486 = vmatprep.subr.mxu0 0.0
    %487 = vmatpush1.msra.mxu0 0.0
    %488 = vmatprep.subr.mxu0 0.0
    %489 = vmatpush1.msra.mxu0 0.0
    %490 = vmatprep.subr.mxu0 0.0
    %491 = vmatpush1.msra.mxu0 0.0
    %492 = vmatprep.subr.mxu0 0.0
    %493 = vmatpush1.msra.mxu0 0.0
    %494 = vmatprep.subr.mxu0 0.0
    %495 = vmatpush1.msra.mxu0 0.0
    %496 = vmatprep.subr.mxu0 0.0
    %497 = vmatpush1.msra.mxu0 0.0
    %498 = vmatprep.subr.mxu0 0.0
    %499 = vmatpush1.msra.mxu0 0.0
    %500 = vmatprep.mubr.f32.mxu0 0.0
    %501 = vmatmul.mubr.f32.gmra.mrb[0].mxu0 %v354
    %v502 = vpop.f32.mrb[0].mxu0
    %v503 = vadd.f32 0.0, %v502
    %v504 = vpop.f32.mrb[0].mxu0
    %505 = vdwg.mxu0
    %v506 = vadd.f32 %v267, %v432
    %v507 = vadd.f32 %v269, %v434
    %v508 = vadd.f32 %v338, %v503
    %509 = vrot.lane.b32.xlu0 %v15, 110
    %v510 = vpop.permute.xlu0 %509
    %511 = vrot.lane.b32.xlu0 %v20, 110
    %v512 = vpop.permute.xlu0 %511
    %513 = vrot.lane.b32.xlu0 %v16, 110
    %v514 = vpop.permute.xlu0 %513
    %vm515 = vcmp.lt.s32.totalorder %v29, 110
    %v516 = vsel %vm515, %v512, %v514
    %v517 = vsel %vm515, %v510, %v512
    %v518 = vsel %vm515, %v514, %v510
    %s519 = scalar_lea.vmem %s1, 24
    %v520 = vld [vmem:[%s519] sm:$0xff]
    %v522 = vsel %vm36, %v520, 0
    %v525 = vsel %vm40, %v517, 0
    %v528 = vsel %vm40, %v516, 0
    %v531 = vsel %vm40, %v518, 0
    %533 = vmatprep.subr.mxu0 %v528
    %534 = vmatpush1.msra.mxu0 %v525
    %535 = vmatprep.subr.mxu0 0.0
    %536 = vmatpush1.msra.mxu0 0.0
    %537 = vmatprep.subr.mxu0 0.0
    %538 = vmatpush1.msra.mxu0 0.0
    %539 = vmatprep.subr.mxu0 0.0
    %540 = vmatpush1.msra.mxu0 0.0
    %541 = vmatprep.subr.mxu0 0.0
    %542 = vmatpush1.msra.mxu0 0.0
    %543 = vmatprep.subr.mxu0 0.0
    %544 = vmatpush1.msra.mxu0 0.0
    %545 = vmatprep.subr.mxu0 0.0
    %546 = vmatpush1.msra.mxu0 0.0
    %547 = vmatprep.subr.mxu0 0.0
    %548 = vmatpush1.msra.mxu0 0.0
    %549 = vmatprep.subr.mxu0 0.0
    %550 = vmatpush1.msra.mxu0 0.0
    %551 = vmatprep.subr.mxu0 0.0
    %552 = vmatpush1.msra.mxu0 0.0
    %553 = vmatprep.subr.mxu0 0.0
    %554 = vmatpush1.msra.mxu0 0.0
    %555 = vmatprep.subr.mxu0 0.0
    %556 = vmatpush1.msra.mxu0 0.0
    %557 = vmatprep.subr.mxu0 0.0
    %558 = vmatpush1.msra.mxu0 0.0
    %559 = vmatprep.subr.mxu0 0.0
    %560 = vmatpush1.msra.mxu0 0.0
    %561 = vmatprep.subr.mxu0 0.0
    %562 = vmatpush1.msra.mxu0 0.0
    %563 = vmatprep.subr.mxu0 0.0
    %564 = vmatpush1.msra.mxu0 0.0
    %565 = vmatprep.subr.mxu0 0.0
    %566 = vmatpush1.msra.mxu0 0.0
    %567 = vmatprep.subr.mxu0 0.0
    %568 = vmatpush1.msra.mxu0 0.0
    %569 = vmatprep.subr.mxu0 0.0
    %570 = vmatpush1.msra.mxu0 0.0
    %571 = vmatprep.subr.mxu0 0.0
    %572 = vmatpush1.msra.mxu0 0.0
    %573 = vmatprep.subr.mxu0 0.0
    %574 = vmatpush1.msra.mxu0 0.0
    %575 = vmatprep.subr.mxu0 0.0
    %576 = vmatpush1.msra.mxu0 0.0
    %577 = vmatprep.subr.mxu0 0.0
    %578 = vmatpush1.msra.mxu0 0.0
    %579 = vmatprep.subr.mxu0 0.0
    %580 = vmatpush1.msra.mxu0 0.0
    %581 = vmatprep.subr.mxu0 0.0
    %582 = vmatpush1.msra.mxu0 0.0
    %583 = vmatprep.subr.mxu0 0.0
    %584 = vmatpush1.msra.mxu0 0.0
    %585 = vmatprep.subr.mxu0 0.0
    %586 = vmatpush1.msra.mxu0 0.0
    %587 = vmatprep.subr.mxu0 0.0
    %588 = vmatpush1.msra.mxu0 0.0
    %589 = vmatprep.subr.mxu0 0.0
    %590 = vmatpush1.msra.mxu0 0.0
    %591 = vmatprep.subr.mxu0 0.0
    %592 = vmatpush1.msra.mxu0 0.0
    %593 = vmatprep.subr.mxu0 0.0
    %594 = vmatpush1.msra.mxu0 0.0
    %595 = vmatprep.subr.mxu0 0.0
    %596 = vmatpush1.msra.mxu0 0.0
    %597 = vmatprep.mubr.f32.mxu0 0.0
    %598 = vmatmul.mubr.f32.gmra.mrb[0].mxu0 %v522
    %v599 = vpop.f32.mrb[0].mxu0
    %v600 = vadd.f32 0.0, %v599
    %v601 = vpop.f32.mrb[0].mxu0
    %v602 = vadd.f32 0.0, %v601
    %603 = vdwg.mxu0
    %604 = vmatprep.subr.mxu0 0.0
    %605 = vmatpush1.msra.mxu0 %v531
    %606 = vmatprep.subr.mxu0 0.0
    %607 = vmatpush1.msra.mxu0 0.0
    %608 = vmatprep.subr.mxu0 0.0
    %609 = vmatpush1.msra.mxu0 0.0
    %610 = vmatprep.subr.mxu0 0.0
    %611 = vmatpush1.msra.mxu0 0.0
    %612 = vmatprep.subr.mxu0 0.0
    %613 = vmatpush1.msra.mxu0 0.0
    %614 = vmatprep.subr.mxu0 0.0
    %615 = vmatpush1.msra.mxu0 0.0
    %616 = vmatprep.subr.mxu0 0.0
    %617 = vmatpush1.msra.mxu0 0.0
    %618 = vmatprep.subr.mxu0 0.0
    %619 = vmatpush1.msra.mxu0 0.0
    %620 = vmatprep.subr.mxu0 0.0
    %621 = vmatpush1.msra.mxu0 0.0
    %622 = vmatprep.subr.mxu0 0.0
    %623 = vmatpush1.msra.mxu0 0.0
    %624 = vmatprep.subr.mxu0 0.0
    %625 = vmatpush1.msra.mxu0 0.0
    %626 = vmatprep.subr.mxu0 0.0
    %627 = vmatpush1.msra.mxu0 0.0
    %628 = vmatprep.subr.mxu0 0.0
    %629 = vmatpush1.msra.mxu0 0.0
    %630 = vmatprep.subr.mxu0 0.0
    %631 = vmatpush1.msra.mxu0 0.0
    %632 = vmatprep.subr.mxu0 0.0
    %633 = vmatpush1.msra.mxu0 0.0
    %634 = vmatprep.subr.mxu0 0.0
    %635 = vmatpush1.msra.mxu0 0.0
    %636 = vmatprep.subr.mxu0 0.0
    %637 = vmatpush1.msra.mxu0 0.0
    %638 = vmatprep.subr.mxu0 0.0
    %639 = vmatpush1.msra.mxu0 0.0
    %640 = vmatprep.subr.mxu0 0.0
    %641 = vmatpush1.msra.mxu0 0.0
    %642 = vmatprep.subr.mxu0 0.0
    %643 = vmatpush1.msra.mxu0 0.0
    %644 = vmatprep.subr.mxu0 0.0
    %645 = vmatpush1.msra.mxu0 0.0
    %646 = vmatprep.subr.mxu0 0.0
    %647 = vmatpush1.msra.mxu0 0.0
    %648 = vmatprep.subr.mxu0 0.0
    %649 = vmatpush1.msra.mxu0 0.0
    %650 = vmatprep.subr.mxu0 0.0
    %651 = vmatpush1.msra.mxu0 0.0
    %652 = vmatprep.subr.mxu0 0.0
    %653 = vmatpush1.msra.mxu0 0.0
    %654 = vmatprep.subr.mxu0 0.0
    %655 = vmatpush1.msra.mxu0 0.0
    %656 = vmatprep.subr.mxu0 0.0
    %657 = vmatpush1.msra.mxu0 0.0
    %658 = vmatprep.subr.mxu0 0.0
    %659 = vmatpush1.msra.mxu0 0.0
    %660 = vmatprep.subr.mxu0 0.0
    %661 = vmatpush1.msra.mxu0 0.0
    %662 = vmatprep.subr.mxu0 0.0
    %663 = vmatpush1.msra.mxu0 0.0
    %664 = vmatprep.subr.mxu0 0.0
    %665 = vmatpush1.msra.mxu0 0.0
    %666 = vmatprep.subr.mxu0 0.0
    %667 = vmatpush1.msra.mxu0 0.0
    %668 = vmatprep.mubr.f32.mxu0 0.0
    %669 = vmatmul.mubr.f32.gmra.mrb[0].mxu0 %v522
    %v670 = vpop.f32.mrb[0].mxu0
    %v671 = vadd.f32 0.0, %v670
    %v672 = vpop.f32.mrb[0].mxu0
    %673 = vdwg.mxu0
    %v674 = vadd.f32 %v506, %v600
    %v675 = vadd.f32 %v507, %v602
    %v676 = vadd.f32 %v508, %v671
    %677 = vrot.lane.b32.xlu0 %v15, 109
    %v678 = vpop.permute.xlu0 %677
    %679 = vrot.lane.b32.xlu0 %v20, 109
    %v680 = vpop.permute.xlu0 %679
    %681 = vrot.lane.b32.xlu0 %v16, 109
    %v682 = vpop.permute.xlu0 %681
    %vm683 = vcmp.lt.s32.totalorder %v29, 109
    %v684 = vsel %vm683, %v680, %v682
    %v685 = vsel %vm683, %v678, %v680
    %v686 = vsel %vm683, %v682, %v678
    %s687 = scalar_lea.vmem %s1, 32
    %v688 = vld [vmem:[%s687] sm:$0xff]
    %v690 = vsel %vm36, %v688, 0
    %v693 = vsel %vm40, %v685, 0
    %v696 = vsel %vm40, %v684, 0
    %v699 = vsel %vm40, %v686, 0
    %701 = vmatprep.subr.mxu0 %v696
    %702 = vmatpush1.msra.mxu0 %v693
    %703 = vmatprep.subr.mxu0 0.0
    %704 = vmatpush1.msra.mxu0 0.0
    %705 = vmatprep.subr.mxu0 0.0
    %706 = vmatpush1.msra.mxu0 0.0
    %707 = vmatprep.subr.mxu0 0.0
    %708 = vmatpush1.msra.mxu0 0.0
    %709 = vmatprep.subr.mxu0 0.0
    %710 = vmatpush1.msra.mxu0 0.0
    %711 = vmatprep.subr.mxu0 0.0
    %712 = vmatpush1.msra.mxu0 0.0
    %713 = vmatprep.subr.mxu0 0.0
    %714 = vmatpush1.msra.mxu0 0.0
    %715 = vmatprep.subr.mxu0 0.0
    %716 = vmatpush1.msra.mxu0 0.0
    %717 = vmatprep.subr.mxu0 0.0
    %718 = vmatpush1.msra.mxu0 0.0
    %719 = vmatprep.subr.mxu0 0.0
    %720 = vmatpush1.msra.mxu0 0.0
    %721 = vmatprep.subr.mxu0 0.0
    %722 = vmatpush1.msra.mxu0 0.0
    %723 = vmatprep.subr.mxu0 0.0
    %724 = vmatpush1.msra.mxu0 0.0
    %725 = vmatprep.subr.mxu0 0.0
    %726 = vmatpush1.msra.mxu0 0.0
    %727 = vmatprep.subr.mxu0 0.0
    %728 = vmatpush1.msra.mxu0 0.0
    %729 = vmatprep.subr.mxu0 0.0
    %730 = vmatpush1.msra.mxu0 0.0
    %731 = vmatprep.subr.mxu0 0.0
    %732 = vmatpush1.msra.mxu0 0.0
    %733 = vmatprep.subr.mxu0 0.0
    %734 = vmatpush1.msra.mxu0 0.0
    %735 = vmatprep.subr.mxu0 0.0
    %736 = vmatpush1.msra.mxu0 0.0
    %737 = vmatprep.subr.mxu0 0.0
    %738 = vmatpush1.msra.mxu0 0.0
    %739 = vmatprep.subr.mxu0 0.0
    %740 = vmatpush1.msra.mxu0 0.0
    %741 = vmatprep.subr.mxu0 0.0
    %742 = vmatpush1.msra.mxu0 0.0
    %743 = vmatprep.subr.mxu0 0.0
    %744 = vmatpush1.msra.mxu0 0.0
    %745 = vmatprep.subr.mxu0 0.0
    %746 = vmatpush1.msra.mxu0 0.0
    %747 = vmatprep.subr.mxu0 0.0
    %748 = vmatpush1.msra.mxu0 0.0
    %749 = vmatprep.subr.mxu0 0.0
    %750 = vmatpush1.msra.mxu0 0.0
    %751 = vmatprep.subr.mxu0 0.0
    %752 = vmatpush1.msra.mxu0 0.0
    %753 = vmatprep.subr.mxu0 0.0
    %754 = vmatpush1.msra.mxu0 0.0
    %755 = vmatprep.subr.mxu0 0.0
    %756 = vmatpush1.msra.mxu0 0.0
    %757 = vmatprep.subr.mxu0 0.0
    %758 = vmatpush1.msra.mxu0 0.0
    %759 = vmatprep.subr.mxu0 0.0
    %760 = vmatpush1.msra.mxu0 0.0
    %761 = vmatprep.subr.mxu0 0.0
    %762 = vmatpush1.msra.mxu0 0.0
    %763 = vmatprep.subr.mxu0 0.0
    %764 = vmatpush1.msra.mxu0 0.0
    %765 = vmatprep.mubr.f32.mxu0 0.0
    %766 = vmatmul.mubr.f32.gmra.mrb[0].mxu0 %v690
    %v767 = vpop.f32.mrb[0].mxu0
    %v768 = vadd.f32 0.0, %v767
    %v769 = vpop.f32.mrb[0].mxu0
    %v770 = vadd.f32 0.0, %v769
    %771 = vdwg.mxu0
    %772 = vmatprep.subr.mxu0 0.0
    %773 = vmatpush1.msra.mxu0 %v699
    %774 = vmatprep.subr.mxu0 0.0
    %775 = vmatpush1.msra.mxu0 0.0
    %776 = vmatprep.subr.mxu0 0.0
    %777 = vmatpush1.msra.mxu0 0.0
    %778 = vmatprep.subr.mxu0 0.0
    %779 = vmatpush1.msra.mxu0 0.0
    %780 = vmatprep.subr.mxu0 0.0
    %781 = vmatpush1.msra.mxu0 0.0
    %782 = vmatprep.subr.mxu0 0.0
    %783 = vmatpush1.msra.mxu0 0.0
    %784 = vmatprep.subr.mxu0 0.0
    %785 = vmatpush1.msra.mxu0 0.0
    %786 = vmatprep.subr.mxu0 0.0
    %787 = vmatpush1.msra.mxu0 0.0
    %788 = vmatprep.subr.mxu0 0.0
    %789 = vmatpush1.msra.mxu0 0.0
    %790 = vmatprep.subr.mxu0 0.0
    %791 = vmatpush1.msra.mxu0 0.0
    %792 = vmatprep.subr.mxu0 0.0
    %793 = vmatpush1.msra.mxu0 0.0
    %794 = vmatprep.subr.mxu0 0.0
    %795 = vmatpush1.msra.mxu0 0.0
    %796 = vmatprep.subr.mxu0 0.0
    %797 = vmatpush1.msra.mxu0 0.0
    %798 = vmatprep.subr.mxu0 0.0
    %799 = vmatpush1.msra.mxu0 0.0
    %800 = vmatprep.subr.mxu0 0.0
    %801 = vmatpush1.msra.mxu0 0.0
    %802 = vmatprep.subr.mxu0 0.0
    %803 = vmatpush1.msra.mxu0 0.0
    %804 = vmatprep.subr.mxu0 0.0
    %805 = vmatpush1.msra.mxu0 0.0
    %806 = vmatprep.subr.mxu0 0.0
    %807 = vmatpush1.msra.mxu0 0.0
    %808 = vmatprep.subr.mxu0 0.0
    %809 = vmatpush1.msra.mxu0 0.0
    %810 = vmatprep.subr.mxu0 0.0
    %811 = vmatpush1.msra.mxu0 0.0
    %812 = vmatprep.subr.mxu0 0.0
    %813 = vmatpush1.msra.mxu0 0.0
    %814 = vmatprep.subr.mxu0 0.0
    %815 = vmatpush1.msra.mxu0 0.0
    %816 = vmatprep.subr.mxu0 0.0
    %817 = vmatpush1.msra.mxu0 0.0
    %818 = vmatprep.subr.mxu0 0.0
    %819 = vmatpush1.msra.mxu0 0.0
    %820 = vmatprep.subr.mxu0 0.0
    %821 = vmatpush1.msra.mxu0 0.0
    %822 = vmatprep.subr.mxu0 0.0
    %823 = vmatpush1.msra.mxu0 0.0
    %824 = vmatprep.subr.mxu0 0.0
    %825 = vmatpush1.msra.mxu0 0.0
    %826 = vmatprep.subr.mxu0 0.0
    %827 = vmatpush1.msra.mxu0 0.0
    %828 = vmatprep.subr.mxu0 0.0
    %829 = vmatpush1.msra.mxu0 0.0
    %830 = vmatprep.subr.mxu0 0.0
    %831 = vmatpush1.msra.mxu0 0.0
    %832 = vmatprep.subr.mxu0 0.0
    %833 = vmatpush1.msra.mxu0 0.0
    %834 = vmatprep.subr.mxu0 0.0
    %835 = vmatpush1.msra.mxu0 0.0
    %836 = vmatprep.mubr.f32.mxu0 0.0
    %837 = vmatmul.mubr.f32.gmra.mrb[0].mxu0 %v690
    %v838 = vpop.f32.mrb[0].mxu0
    %v839 = vadd.f32 0.0, %v838
    %v840 = vpop.f32.mrb[0].mxu0
    %841 = vdwg.mxu0
    %v842 = vadd.f32 %v674, %v768
    %v843 = vadd.f32 %v675, %v770
    %v844 = vadd.f32 %v676, %v839
    %845 = vrot.lane.b32.xlu0 %v15, 108
    %v846 = vpop.permute.xlu0 %845
    %847 = vrot.lane.b32.xlu0 %v20, 108
    %v848 = vpop.permute.xlu0 %847
    %849 = vrot.lane.b32.xlu0 %v16, 108
    %v850 = vpop.permute.xlu0 %849
    %vm851 = vcmp.lt.s32.totalorder %v29, 108
    %v852 = vsel %vm851, %v848, %v850
    %v853 = vsel %vm851, %v846, %v848
    %v854 = vsel %vm851, %v850, %v846
    %s855 = scalar_lea.vmem %s1, 40
    %v856 = vld [vmem:[%s855] sm:$0xff]
    %v858 = vsel %vm36, %v856, 0
    %v861 = vsel %vm40, %v853, 0
    %v864 = vsel %vm40, %v852, 0
    %v867 = vsel %vm40, %v854, 0
    %869 = vmatprep.subr.mxu0 %v864
    %870 = vmatpush1.msra.mxu0 %v861
    %871 = vmatprep.subr.mxu0 0.0
    %872 = vmatpush1.msra.mxu0 0.0
    %873 = vmatprep.subr.mxu0 0.0
    %874 = vmatpush1.msra.mxu0 0.0
    %875 = vmatprep.subr.mxu0 0.0
    %876 = vmatpush1.msra.mxu0 0.0
    %877 = vmatprep.subr.mxu0 0.0
    %878 = vmatpush1.msra.mxu0 0.0
    %879 = vmatprep.subr.mxu0 0.0
    %880 = vmatpush1.msra.mxu0 0.0
    %881 = vmatprep.subr.mxu0 0.0
    %882 = vmatpush1.msra.mxu0 0.0
    %883 = vmatprep.subr.mxu0 0.0
    %884 = vmatpush1.msra.mxu0 0.0
    %885 = vmatprep.subr.mxu0 0.0
    %886 = vmatpush1.msra.mxu0 0.0
    %887 = vmatprep.subr.mxu0 0.0
    %888 = vmatpush1.msra.mxu0 0.0
    %889 = vmatprep.subr.mxu0 0.0
    %890 = vmatpush1.msra.mxu0 0.0
    %891 = vmatprep.subr.mxu0 0.0
    %892 = vmatpush1.msra.mxu0 0.0
    %893 = vmatprep.subr.mxu0 0.0
    %894 = vmatpush1.msra.mxu0 0.0
    %895 = vmatprep.subr.mxu0 0.0
    %896 = vmatpush1.msra.mxu0 0.0
    %897 = vmatprep.subr.mxu0 0.0
    %898 = vmatpush1.msra.mxu0 0.0
    %899 = vmatprep.subr.mxu0 0.0
    %900 = vmatpush1.msra.mxu0 0.0
    %901 = vmatprep.subr.mxu0 0.0
    %902 = vmatpush1.msra.mxu0 0.0
    %903 = vmatprep.subr.mxu0 0.0
    %904 = vmatpush1.msra.mxu0 0.0
    %905 = vmatprep.subr.mxu0 0.0
    %906 = vmatpush1.msra.mxu0 0.0
    %907 = vmatprep.subr.mxu0 0.0
    %908 = vmatpush1.msra.mxu0 0.0
    %909 = vmatprep.subr.mxu0 0.0
    %910 = vmatpush1.msra.mxu0 0.0
    %911 = vmatprep.subr.mxu0 0.0
    %912 = vmatpush1.msra.mxu0 0.0
    %913 = vmatprep.subr.mxu0 0.0
    %914 = vmatpush1.msra.mxu0 0.0
    %915 = vmatprep.subr.mxu0 0.0
    %916 = vmatpush1.msra.mxu0 0.0
    %917 = vmatprep.subr.mxu0 0.0
    %918 = vmatpush1.msra.mxu0 0.0
    %919 = vmatprep.subr.mxu0 0.0
    %920 = vmatpush1.msra.mxu0 0.0
    %921 = vmatprep.subr.mxu0 0.0
    %922 = vmatpush1.msra.mxu0 0.0
    %923 = vmatprep.subr.mxu0 0.0
    %924 = vmatpush1.msra.mxu0 0.0
    %925 = vmatprep.subr.mxu0 0.0
    %926 = vmatpush1.msra.mxu0 0.0
    %927 = vmatprep.subr.mxu0 0.0
    %928 = vmatpush1.msra.mxu0 0.0
    %929 = vmatprep.subr.mxu0 0.0
    %930 = vmatpush1.msra.mxu0 0.0
    %931 = vmatprep.subr.mxu0 0.0
    %932 = vmatpush1.msra.mxu0 0.0
    %933 = vmatprep.mubr.f32.mxu0 0.0
    %934 = vmatmul.mubr.f32.gmra.mrb[0].mxu0 %v858
    %v935 = vpop.f32.mrb[0].mxu0
    %v936 = vadd.f32 0.0, %v935
    %v937 = vpop.f32.mrb[0].mxu0
    %v938 = vadd.f32 0.0, %v937
    %939 = vdwg.mxu0
    %940 = vmatprep.subr.mxu0 0.0
    %941 = vmatpush1.msra.mxu0 %v867
    %942 = vmatprep.subr.mxu0 0.0
    %943 = vmatpush1.msra.mxu0 0.0
    %944 = vmatprep.subr.mxu0 0.0
    %945 = vmatpush1.msra.mxu0 0.0
    %946 = vmatprep.subr.mxu0 0.0
    %947 = vmatpush1.msra.mxu0 0.0
    %948 = vmatprep.subr.mxu0 0.0
    %949 = vmatpush1.msra.mxu0 0.0
    %950 = vmatprep.subr.mxu0 0.0
    %951 = vmatpush1.msra.mxu0 0.0
    %952 = vmatprep.subr.mxu0 0.0
    %953 = vmatpush1.msra.mxu0 0.0
    %954 = vmatprep.subr.mxu0 0.0
    %955 = vmatpush1.msra.mxu0 0.0
    %956 = vmatprep.subr.mxu0 0.0
    %957 = vmatpush1.msra.mxu0 0.0
    %958 = vmatprep.subr.mxu0 0.0
    %959 = vmatpush1.msra.mxu0 0.0
    %960 = vmatprep.subr.mxu0 0.0
    %961 = vmatpush1.msra.mxu0 0.0
    %962 = vmatprep.subr.mxu0 0.0
    %963 = vmatpush1.msra.mxu0 0.0
    %964 = vmatprep.subr.mxu0 0.0
    %965 = vmatpush1.msra.mxu0 0.0
    %966 = vmatprep.subr.mxu0 0.0
    %967 = vmatpush1.msra.mxu0 0.0
    %968 = vmatprep.subr.mxu0 0.0
    %969 = vmatpush1.msra.mxu0 0.0
    %970 = vmatprep.subr.mxu0 0.0
    %971 = vmatpush1.msra.mxu0 0.0
    %972 = vmatprep.subr.mxu0 0.0
    %973 = vmatpush1.msra.mxu0 0.0
    %974 = vmatprep.subr.mxu0 0.0
    %975 = vmatpush1.msra.mxu0 0.0
    %976 = vmatprep.subr.mxu0 0.0
    %977 = vmatpush1.msra.mxu0 0.0
    %978 = vmatprep.subr.mxu0 0.0
    %979 = vmatpush1.msra.mxu0 0.0
    %980 = vmatprep.subr.mxu0 0.0
    %981 = vmatpush1.msra.mxu0 0.0
    %982 = vmatprep.subr.mxu0 0.0
    %983 = vmatpush1.msra.mxu0 0.0
    %984 = vmatprep.subr.mxu0 0.0
    %985 = vmatpush1.msra.mxu0 0.0
    %986 = vmatprep.subr.mxu0 0.0
    %987 = vmatpush1.msra.mxu0 0.0
    %988 = vmatprep.subr.mxu0 0.0
    %989 = vmatpush1.msra.mxu0 0.0
    %990 = vmatprep.subr.mxu0 0.0
    %991 = vmatpush1.msra.mxu0 0.0
    %992 = vmatprep.subr.mxu0 0.0
    %993 = vmatpush1.msra.mxu0 0.0
    %994 = vmatprep.subr.mxu0 0.0
    %995 = vmatpush1.msra.mxu0 0.0
    %996 = vmatprep.subr.mxu0 0.0
    %997 = vmatpush1.msra.mxu0 0.0
    %998 = vmatprep.subr.mxu0 0.0
    %999 = vmatpush1.msra.mxu0 0.0
    %1000 = vmatprep.subr.mxu0 0.0
    %1001 = vmatpush1.msra.mxu0 0.0
    %1002 = vmatprep.subr.mxu0 0.0
    %1003 = vmatpush1.msra.mxu0 0.0
    %1004 = vmatprep.mubr.f32.mxu0 0.0
    %1005 = vmatmul.mubr.f32.gmra.mrb[0].mxu0 %v858
    %v1006 = vpop.f32.mrb[0].mxu0
    %v1007 = vadd.f32 0.0, %v1006
    %v1008 = vpop.f32.mrb[0].mxu0
    %1009 = vdwg.mxu0
    %v1010 = vadd.f32 %v842, %v936
    %v1011 = vadd.f32 %v843, %v938
    %v1012 = vadd.f32 %v844, %v1007
    %1013 = vrot.lane.b32.xlu0 %v15, 92
    %v1014 = vpop.permute.xlu0 %1013
    %1015 = vrot.lane.b32.xlu0 %v20, 92
    %v1016 = vpop.permute.xlu0 %1015
    %1017 = vrot.lane.b32.xlu0 %v16, 92
    %v1018 = vpop.permute.xlu0 %1017
    %vm1019 = vcmp.lt.s32.totalorder %v29, 92
    %v1020 = vsel %vm1019, %v1016, %v1018
    %v1021 = vsel %vm1019, %v1014, %v1016
    %v1022 = vsel %vm1019, %v1018, %v1014
    %s1023 = scalar_lea.vmem %s1, 48
    %v1024 = vld [vmem:[%s1023] sm:$0xff]
    %v1026 = vsel %vm36, %v1024, 0
    %v1029 = vsel %vm40, %v1021, 0
    %v1032 = vsel %vm40, %v1020, 0
    %v1035 = vsel %vm40, %v1022, 0
    %1037 = vmatprep.subr.mxu0 %v1032
    %1038 = vmatpush1.msra.mxu0 %v1029
    %1039 = vmatprep.subr.mxu0 0.0
    %1040 = vmatpush1.msra.mxu0 0.0
    %1041 = vmatprep.subr.mxu0 0.0
    %1042 = vmatpush1.msra.mxu0 0.0
    %1043 = vmatprep.subr.mxu0 0.0
    %1044 = vmatpush1.msra.mxu0 0.0
    %1045 = vmatprep.subr.mxu0 0.0
    %1046 = vmatpush1.msra.mxu0 0.0
    %1047 = vmatprep.subr.mxu0 0.0
    %1048 = vmatpush1.msra.mxu0 0.0
    %1049 = vmatprep.subr.mxu0 0.0
    %1050 = vmatpush1.msra.mxu0 0.0
    %1051 = vmatprep.subr.mxu0 0.0
    %1052 = vmatpush1.msra.mxu0 0.0
    %1053 = vmatprep.subr.mxu0 0.0
    %1054 = vmatpush1.msra.mxu0 0.0
    %1055 = vmatprep.subr.mxu0 0.0
    %1056 = vmatpush1.msra.mxu0 0.0
    %1057 = vmatprep.subr.mxu0 0.0
    %1058 = vmatpush1.msra.mxu0 0.0
    %1059 = vmatprep.subr.mxu0 0.0
    %1060 = vmatpush1.msra.mxu0 0.0
    %1061 = vmatprep.subr.mxu0 0.0
    %1062 = vmatpush1.msra.mxu0 0.0
    %1063 = vmatprep.subr.mxu0 0.0
    %1064 = vmatpush1.msra.mxu0 0.0
    %1065 = vmatprep.subr.mxu0 0.0
    %1066 = vmatpush1.msra.mxu0 0.0
    %1067 = vmatprep.subr.mxu0 0.0
    %1068 = vmatpush1.msra.mxu0 0.0
    %1069 = vmatprep.subr.mxu0 0.0
    %1070 = vmatpush1.msra.mxu0 0.0
    %1071 = vmatprep.subr.mxu0 0.0
    %1072 = vmatpush1.msra.mxu0 0.0
    %1073 = vmatprep.subr.mxu0 0.0
    %1074 = vmatpush1.msra.mxu0 0.0
    %1075 = vmatprep.subr.mxu0 0.0
    %1076 = vmatpush1.msra.mxu0 0.0
    %1077 = vmatprep.subr.mxu0 0.0
    %1078 = vmatpush1.msra.mxu0 0.0
    %1079 = vmatprep.subr.mxu0 0.0
    %1080 = vmatpush1.msra.mxu0 0.0
    %1081 = vmatprep.subr.mxu0 0.0
    %1082 = vmatpush1.msra.mxu0 0.0
    %1083 = vmatprep.subr.mxu0 0.0
    %1084 = vmatpush1.msra.mxu0 0.0
    %1085 = vmatprep.subr.mxu0 0.0
    %1086 = vmatpush1.msra.mxu0 0.0
    %1087 = vmatprep.subr.mxu0 0.0
    %1088 = vmatpush1.msra.mxu0 0.0
    %1089 = vmatprep.subr.mxu0 0.0
    %1090 = vmatpush1.msra.mxu0 0.0
    %1091 = vmatprep.subr.mxu0 0.0
    %1092 = vmatpush1.msra.mxu0 0.0
    %1093 = vmatprep.subr.mxu0 0.0
    %1094 = vmatpush1.msra.mxu0 0.0
    %1095 = vmatprep.subr.mxu0 0.0
    %1096 = vmatpush1.msra.mxu0 0.0
    %1097 = vmatprep.subr.mxu0 0.0
    %1098 = vmatpush1.msra.mxu0 0.0
    %1099 = vmatprep.subr.mxu0 0.0
    %1100 = vmatpush1.msra.mxu0 0.0
    %1101 = vmatprep.mubr.f32.mxu0 0.0
    %1102 = vmatmul.mubr.f32.gmra.mrb[0].mxu0 %v1026
    %v1103 = vpop.f32.mrb[0].mxu0
    %v1104 = vadd.f32 0.0, %v1103
    %v1105 = vpop.f32.mrb[0].mxu0
    %v1106 = vadd.f32 0.0, %v1105
    %1107 = vdwg.mxu0
    %1108 = vmatprep.subr.mxu0 0.0
    %1109 = vmatpush1.msra.mxu0 %v1035
    %1110 = vmatprep.subr.mxu0 0.0
    %1111 = vmatpush1.msra.mxu0 0.0
    %1112 = vmatprep.subr.mxu0 0.0
    %1113 = vmatpush1.msra.mxu0 0.0
    %1114 = vmatprep.subr.mxu0 0.0
    %1115 = vmatpush1.msra.mxu0 0.0
    %1116 = vmatprep.subr.mxu0 0.0
    %1117 = vmatpush1.msra.mxu0 0.0
    %1118 = vmatprep.subr.mxu0 0.0
    %1119 = vmatpush1.msra.mxu0 0.0
    %1120 = vmatprep.subr.mxu0 0.0
    %1121 = vmatpush1.msra.mxu0 0.0
    %1122 = vmatprep.subr.mxu0 0.0
    %1123 = vmatpush1.msra.mxu0 0.0
    %1124 = vmatprep.subr.mxu0 0.0
    %1125 = vmatpush1.msra.mxu0 0.0
    %1126 = vmatprep.subr.mxu0 0.0
    %1127 = vmatpush1.msra.mxu0 0.0
    %1128 = vmatprep.subr.mxu0 0.0
    %1129 = vmatpush1.msra.mxu0 0.0
    %1130 = vmatprep.subr.mxu0 0.0
    %1131 = vmatpush1.msra.mxu0 0.0
    %1132 = vmatprep.subr.mxu0 0.0
    %1133 = vmatpush1.msra.mxu0 0.0
    %1134 = vmatprep.subr.mxu0 0.0
    %1135 = vmatpush1.msra.mxu0 0.0
    %1136 = vmatprep.subr.mxu0 0.0
    %1137 = vmatpush1.msra.mxu0 0.0
    %1138 = vmatprep.subr.mxu0 0.0
    %1139 = vmatpush1.msra.mxu0 0.0
    %1140 = vmatprep.subr.mxu0 0.0
    %1141 = vmatpush1.msra.mxu0 0.0
    %1142 = vmatprep.subr.mxu0 0.0
    %1143 = vmatpush1.msra.mxu0 0.0
    %1144 = vmatprep.subr.mxu0 0.0
    %1145 = vmatpush1.msra.mxu0 0.0
    %1146 = vmatprep.subr.mxu0 0.0
    %1147 = vmatpush1.msra.mxu0 0.0
    %1148 = vmatprep.subr.mxu0 0.0
    %1149 = vmatpush1.msra.mxu0 0.0
    %1150 = vmatprep.subr.mxu0 0.0
    %1151 = vmatpush1.msra.mxu0 0.0
    %1152 = vmatprep.subr.mxu0 0.0
    %1153 = vmatpush1.msra.mxu0 0.0
    %1154 = vmatprep.subr.mxu0 0.0
    %1155 = vmatpush1.msra.mxu0 0.0
    %1156 = vmatprep.subr.mxu0 0.0
    %1157 = vmatpush1.msra.mxu0 0.0
    %1158 = vmatprep.subr.mxu0 0.0
    %1159 = vmatpush1.msra.mxu0 0.0
    %1160 = vmatprep.subr.mxu0 0.0
    %1161 = vmatpush1.msra.mxu0 0.0
    %1162 = vmatprep.subr.mxu0 0.0
    %1163 = vmatpush1.msra.mxu0 0.0
    %1164 = vmatprep.subr.mxu0 0.0
    %1165 = vmatpush1.msra.mxu0 0.0
    %1166 = vmatprep.subr.mxu0 0.0
    %1167 = vmatpush1.msra.mxu0 0.0
    %1168 = vmatprep.subr.mxu0 0.0
    %1169 = vmatpush1.msra.mxu0 0.0
    %1170 = vmatprep.subr.mxu0 0.0
    %1171 = vmatpush1.msra.mxu0 0.0
    %1172 = vmatprep.mubr.f32.mxu0 0.0
    %1173 = vmatmul.mubr.f32.gmra.mrb[0].mxu0 %v1026
    %v1174 = vpop.f32.mrb[0].mxu0
    %v1175 = vadd.f32 0.0, %v1174
    %v1176 = vpop.f32.mrb[0].mxu0
    %1177 = vdwg.mxu0
    %v1178 = vadd.f32 %v1010, %v1104
    %v1179 = vadd.f32 %v1011, %v1106
    %v1180 = vadd.f32 %v1012, %v1175
    %1181 = vrot.lane.b32.xlu0 %v15, 91
    %v1182 = vpop.permute.xlu0 %1181
    %1183 = vrot.lane.b32.xlu0 %v20, 91
    %v1184 = vpop.permute.xlu0 %1183
    %1185 = vrot.lane.b32.xlu0 %v16, 91
    %v1186 = vpop.permute.xlu0 %1185
    %vm1187 = vcmp.lt.s32.totalorder %v29, 91
    %v1188 = vsel %vm1187, %v1184, %v1186
    %v1189 = vsel %vm1187, %v1182, %v1184
    %v1190 = vsel %vm1187, %v1186, %v1182
    %s1191 = scalar_lea.vmem %s1, 56
    %v1192 = vld [vmem:[%s1191] sm:$0xff]
    %v1194 = vsel %vm36, %v1192, 0
    %v1197 = vsel %vm40, %v1189, 0
    %v1200 = vsel %vm40, %v1188, 0
    %v1203 = vsel %vm40, %v1190, 0
    %1205 = vmatprep.subr.mxu0 %v1200
    %1206 = vmatpush1.msra.mxu0 %v1197
    %1207 = vmatprep.subr.mxu0 0.0
    %1208 = vmatpush1.msra.mxu0 0.0
    %1209 = vmatprep.subr.mxu0 0.0
    %1210 = vmatpush1.msra.mxu0 0.0
    %1211 = vmatprep.subr.mxu0 0.0
    %1212 = vmatpush1.msra.mxu0 0.0
    %1213 = vmatprep.subr.mxu0 0.0
    %1214 = vmatpush1.msra.mxu0 0.0
    %1215 = vmatprep.subr.mxu0 0.0
    %1216 = vmatpush1.msra.mxu0 0.0
    %1217 = vmatprep.subr.mxu0 0.0
    %1218 = vmatpush1.msra.mxu0 0.0
    %1219 = vmatprep.subr.mxu0 0.0
    %1220 = vmatpush1.msra.mxu0 0.0
    %1221 = vmatprep.subr.mxu0 0.0
    %1222 = vmatpush1.msra.mxu0 0.0
    %1223 = vmatprep.subr.mxu0 0.0
    %1224 = vmatpush1.msra.mxu0 0.0
    %1225 = vmatprep.subr.mxu0 0.0
    %1226 = vmatpush1.msra.mxu0 0.0
    %1227 = vmatprep.subr.mxu0 0.0
    %1228 = vmatpush1.msra.mxu0 0.0
    %1229 = vmatprep.subr.mxu0 0.0
    %1230 = vmatpush1.msra.mxu0 0.0
    %1231 = vmatprep.subr.mxu0 0.0
    %1232 = vmatpush1.msra.mxu0 0.0
    %1233 = vmatprep.subr.mxu0 0.0
    %1234 = vmatpush1.msra.mxu0 0.0
    %1235 = vmatprep.subr.mxu0 0.0
    %1236 = vmatpush1.msra.mxu0 0.0
    %1237 = vmatprep.subr.mxu0 0.0
    %1238 = vmatpush1.msra.mxu0 0.0
    %1239 = vmatprep.subr.mxu0 0.0
    %1240 = vmatpush1.msra.mxu0 0.0
    %1241 = vmatprep.subr.mxu0 0.0
    %1242 = vmatpush1.msra.mxu0 0.0
    %1243 = vmatprep.subr.mxu0 0.0
    %1244 = vmatpush1.msra.mxu0 0.0
    %1245 = vmatprep.subr.mxu0 0.0
    %1246 = vmatpush1.msra.mxu0 0.0
    %1247 = vmatprep.subr.mxu0 0.0
    %1248 = vmatpush1.msra.mxu0 0.0
    %1249 = vmatprep.subr.mxu0 0.0
    %1250 = vmatpush1.msra.mxu0 0.0
    %1251 = vmatprep.subr.mxu0 0.0
    %1252 = vmatpush1.msra.mxu0 0.0
    %1253 = vmatprep.subr.mxu0 0.0
    %1254 = vmatpush1.msra.mxu0 0.0
    %1255 = vmatprep.subr.mxu0 0.0
    %1256 = vmatpush1.msra.mxu0 0.0
    %1257 = vmatprep.subr.mxu0 0.0
    %1258 = vmatpush1.msra.mxu0 0.0
    %1259 = vmatprep.subr.mxu0 0.0
    %1260 = vmatpush1.msra.mxu0 0.0
    %1261 = vmatprep.subr.mxu0 0.0
    %1262 = vmatpush1.msra.mxu0 0.0
    %1263 = vmatprep.subr.mxu0 0.0
    %1264 = vmatpush1.msra.mxu0 0.0
    %1265 = vmatprep.subr.mxu0 0.0
    %1266 = vmatpush1.msra.mxu0 0.0
    %1267 = vmatprep.subr.mxu0 0.0
    %1268 = vmatpush1.msra.mxu0 0.0
    %1269 = vmatprep.mubr.f32.mxu0 0.0
    %1270 = vmatmul.mubr.f32.gmra.mrb[0].mxu0 %v1194
    %v1271 = vpop.f32.mrb[0].mxu0
    %v1272 = vadd.f32 0.0, %v1271
    %v1273 = vpop.f32.mrb[0].mxu0
    %v1274 = vadd.f32 0.0, %v1273
    %1275 = vdwg.mxu0
    %1276 = vmatprep.subr.mxu0 0.0
    %1277 = vmatpush1.msra.mxu0 %v1203
    %1278 = vmatprep.subr.mxu0 0.0
    %1279 = vmatpush1.msra.mxu0 0.0
    %1280 = vmatprep.subr.mxu0 0.0
    %1281 = vmatpush1.msra.mxu0 0.0
    %1282 = vmatprep.subr.mxu0 0.0
    %1283 = vmatpush1.msra.mxu0 0.0
    %1284 = vmatprep.subr.mxu0 0.0
    %1285 = vmatpush1.msra.mxu0 0.0
    %1286 = vmatprep.subr.mxu0 0.0
    %1287 = vmatpush1.msra.mxu0 0.0
    %1288 = vmatprep.subr.mxu0 0.0
    %1289 = vmatpush1.msra.mxu0 0.0
    %1290 = vmatprep.subr.mxu0 0.0
    %1291 = vmatpush1.msra.mxu0 0.0
    %1292 = vmatprep.subr.mxu0 0.0
    %1293 = vmatpush1.msra.mxu0 0.0
    %1294 = vmatprep.subr.mxu0 0.0
    %1295 = vmatpush1.msra.mxu0 0.0
    %1296 = vmatprep.subr.mxu0 0.0
    %1297 = vmatpush1.msra.mxu0 0.0
    %1298 = vmatprep.subr.mxu0 0.0
    %1299 = vmatpush1.msra.mxu0 0.0
    %1300 = vmatprep.subr.mxu0 0.0
    %1301 = vmatpush1.msra.mxu0 0.0
    %1302 = vmatprep.subr.mxu0 0.0
    %1303 = vmatpush1.msra.mxu0 0.0
    %1304 = vmatprep.subr.mxu0 0.0
    %1305 = vmatpush1.msra.mxu0 0.0
    %1306 = vmatprep.subr.mxu0 0.0
    %1307 = vmatpush1.msra.mxu0 0.0
    %1308 = vmatprep.subr.mxu0 0.0
    %1309 = vmatpush1.msra.mxu0 0.0
    %1310 = vmatprep.subr.mxu0 0.0
    %1311 = vmatpush1.msra.mxu0 0.0
    %1312 = vmatprep.subr.mxu0 0.0
    %1313 = vmatpush1.msra.mxu0 0.0
    %1314 = vmatprep.subr.mxu0 0.0
    %1315 = vmatpush1.msra.mxu0 0.0
    %1316 = vmatprep.subr.mxu0 0.0
    %1317 = vmatpush1.msra.mxu0 0.0
    %1318 = vmatprep.subr.mxu0 0.0
    %1319 = vmatpush1.msra.mxu0 0.0
    %1320 = vmatprep.subr.mxu0 0.0
    %1321 = vmatpush1.msra.mxu0 0.0
    %1322 = vmatprep.subr.mxu0 0.0
    %1323 = vmatpush1.msra.mxu0 0.0
    %1324 = vmatprep.subr.mxu0 0.0
    %1325 = vmatpush1.msra.mxu0 0.0
    %1326 = vmatprep.subr.mxu0 0.0
    %1327 = vmatpush1.msra.mxu0 0.0
    %1328 = vmatprep.subr.mxu0 0.0
    %1329 = vmatpush1.msra.mxu0 0.0
    %1330 = vmatprep.subr.mxu0 0.0
    %1331 = vmatpush1.msra.mxu0 0.0
    %1332 = vmatprep.subr.mxu0 0.0
    %1333 = vmatpush1.msra.mxu0 0.0
    %1334 = vmatprep.subr.mxu0 0.0
    %1335 = vmatpush1.msra.mxu0 0.0
    %1336 = vmatprep.subr.mxu0 0.0
    %1337 = vmatpush1.msra.mxu0 0.0
    %1338 = vmatprep.subr.mxu0 0.0
    %1339 = vmatpush1.msra.mxu0 0.0
    %1340 = vmatprep.mubr.f32.mxu0 0.0
    %1341 = vmatmul.mubr.f32.gmra.mrb[0].mxu0 %v1194
    %v1342 = vpop.f32.mrb[0].mxu0
    %v1343 = vadd.f32 0.0, %v1342
    %v1344 = vpop.f32.mrb[0].mxu0
    %1345 = vdwg.mxu0
    %v1346 = vadd.f32 %v1178, %v1272
    %v1347 = vadd.f32 %v1179, %v1274
    %v1348 = vadd.f32 %v1180, %v1343
    %1349 = vrot.lane.b32.xlu0 %v15, 90
    %v1350 = vpop.permute.xlu0 %1349
    %1351 = vrot.lane.b32.xlu0 %v20, 90
    %v1352 = vpop.permute.xlu0 %1351
    %1353 = vrot.lane.b32.xlu0 %v16, 90
    %v1354 = vpop.permute.xlu0 %1353
    %vm1355 = vcmp.lt.s32.totalorder %v29, 90
    %v1356 = vsel %vm1355, %v1352, %v1354
    %v1357 = vsel %vm1355, %v1350, %v1352
    %v1358 = vsel %vm1355, %v1354, %v1350
    %s1359 = scalar_lea.vmem %s1, 64
    %v1360 = vld [vmem:[%s1359] sm:$0xff]
    %v1362 = vsel %vm36, %v1360, 0
    %v1365 = vsel %vm40, %v1357, 0
    %v1368 = vsel %vm40, %v1356, 0
    %v1371 = vsel %vm40, %v1358, 0
    %1373 = vmatprep.subr.mxu0 %v1368
    %1374 = vmatpush1.msra.mxu0 %v1365
    %1375 = vmatprep.subr.mxu0 0.0
    %1376 = vmatpush1.msra.mxu0 0.0
    %1377 = vmatprep.subr.mxu0 0.0
    %1378 = vmatpush1.msra.mxu0 0.0
    %1379 = vmatprep.subr.mxu0 0.0
    %1380 = vmatpush1.msra.mxu0 0.0
    %1381 = vmatprep.subr.mxu0 0.0
    %1382 = vmatpush1.msra.mxu0 0.0
    %1383 = vmatprep.subr.mxu0 0.0
    %1384 = vmatpush1.msra.mxu0 0.0
    %1385 = vmatprep.subr.mxu0 0.0
    %1386 = vmatpush1.msra.mxu0 0.0
    %1387 = vmatprep.subr.mxu0 0.0
    %1388 = vmatpush1.msra.mxu0 0.0
    %1389 = vmatprep.subr.mxu0 0.0
    %1390 = vmatpush1.msra.mxu0 0.0
    %1391 = vmatprep.subr.mxu0 0.0
    %1392 = vmatpush1.msra.mxu0 0.0
    %1393 = vmatprep.subr.mxu0 0.0
    %1394 = vmatpush1.msra.mxu0 0.0
    %1395 = vmatprep.subr.mxu0 0.0
    %1396 = vmatpush1.msra.mxu0 0.0
    %1397 = vmatprep.subr.mxu0 0.0
    %1398 = vmatpush1.msra.mxu0 0.0
    %1399 = vmatprep.subr.mxu0 0.0
    %1400 = vmatpush1.msra.mxu0 0.0
    %1401 = vmatprep.subr.mxu0 0.0
    %1402 = vmatpush1.msra.mxu0 0.0
    %1403 = vmatprep.subr.mxu0 0.0
    %1404 = vmatpush1.msra.mxu0 0.0
    %1405 = vmatprep.subr.mxu0 0.0
    %1406 = vmatpush1.msra.mxu0 0.0
    %1407 = vmatprep.subr.mxu0 0.0
    %1408 = vmatpush1.msra.mxu0 0.0
    %1409 = vmatprep.subr.mxu0 0.0
    %1410 = vmatpush1.msra.mxu0 0.0
    %1411 = vmatprep.subr.mxu0 0.0
    %1412 = vmatpush1.msra.mxu0 0.0
    %1413 = vmatprep.subr.mxu0 0.0
    %1414 = vmatpush1.msra.mxu0 0.0
    %1415 = vmatprep.subr.mxu0 0.0
    %1416 = vmatpush1.msra.mxu0 0.0
    %1417 = vmatprep.subr.mxu0 0.0
    %1418 = vmatpush1.msra.mxu0 0.0
    %1419 = vmatprep.subr.mxu0 0.0
    %1420 = vmatpush1.msra.mxu0 0.0
    %1421 = vmatprep.subr.mxu0 0.0
    %1422 = vmatpush1.msra.mxu0 0.0
    %1423 = vmatprep.subr.mxu0 0.0
    %1424 = vmatpush1.msra.mxu0 0.0
    %1425 = vmatprep.subr.mxu0 0.0
    %1426 = vmatpush1.msra.mxu0 0.0
    %1427 = vmatprep.subr.mxu0 0.0
    %1428 = vmatpush1.msra.mxu0 0.0
    %1429 = vmatprep.subr.mxu0 0.0
    %1430 = vmatpush1.msra.mxu0 0.0
    %1431 = vmatprep.subr.mxu0 0.0
    %1432 = vmatpush1.msra.mxu0 0.0
    %1433 = vmatprep.subr.mxu0 0.0
    %1434 = vmatpush1.msra.mxu0 0.0
    %1435 = vmatprep.subr.mxu0 0.0
    %1436 = vmatpush1.msra.mxu0 0.0
    %1437 = vmatprep.mubr.f32.mxu0 0.0
    %1438 = vmatmul.mubr.f32.gmra.mrb[0].mxu0 %v1362
    %v1439 = vpop.f32.mrb[0].mxu0
    %v1440 = vadd.f32 0.0, %v1439
    %v1441 = vpop.f32.mrb[0].mxu0
    %v1442 = vadd.f32 0.0, %v1441
    %1443 = vdwg.mxu0
    %1444 = vmatprep.subr.mxu0 0.0
    %1445 = vmatpush1.msra.mxu0 %v1371
    %1446 = vmatprep.subr.mxu0 0.0
    %1447 = vmatpush1.msra.mxu0 0.0
    %1448 = vmatprep.subr.mxu0 0.0
    %1449 = vmatpush1.msra.mxu0 0.0
    %1450 = vmatprep.subr.mxu0 0.0
    %1451 = vmatpush1.msra.mxu0 0.0
    %1452 = vmatprep.subr.mxu0 0.0
    %1453 = vmatpush1.msra.mxu0 0.0
    %1454 = vmatprep.subr.mxu0 0.0
    %1455 = vmatpush1.msra.mxu0 0.0
    %1456 = vmatprep.subr.mxu0 0.0
    %1457 = vmatpush1.msra.mxu0 0.0
    %1458 = vmatprep.subr.mxu0 0.0
    %1459 = vmatpush1.msra.mxu0 0.0
    %1460 = vmatprep.subr.mxu0 0.0
    %1461 = vmatpush1.msra.mxu0 0.0
    %1462 = vmatprep.subr.mxu0 0.0
    %1463 = vmatpush1.msra.mxu0 0.0
    %1464 = vmatprep.subr.mxu0 0.0
    %1465 = vmatpush1.msra.mxu0 0.0
    %1466 = vmatprep.subr.mxu0 0.0
    %1467 = vmatpush1.msra.mxu0 0.0
    %1468 = vmatprep.subr.mxu0 0.0
    %1469 = vmatpush1.msra.mxu0 0.0
    %1470 = vmatprep.subr.mxu0 0.0
    %1471 = vmatpush1.msra.mxu0 0.0
    %1472 = vmatprep.subr.mxu0 0.0
    %1473 = vmatpush1.msra.mxu0 0.0
    %1474 = vmatprep.subr.mxu0 0.0
    %1475 = vmatpush1.msra.mxu0 0.0
    %1476 = vmatprep.subr.mxu0 0.0
    %1477 = vmatpush1.msra.mxu0 0.0
    %1478 = vmatprep.subr.mxu0 0.0
    %1479 = vmatpush1.msra.mxu0 0.0
    %1480 = vmatprep.subr.mxu0 0.0
    %1481 = vmatpush1.msra.mxu0 0.0
    %1482 = vmatprep.subr.mxu0 0.0
    %1483 = vmatpush1.msra.mxu0 0.0
    %1484 = vmatprep.subr.mxu0 0.0
    %1485 = vmatpush1.msra.mxu0 0.0
    %1486 = vmatprep.subr.mxu0 0.0
    %1487 = vmatpush1.msra.mxu0 0.0
    %1488 = vmatprep.subr.mxu0 0.0
    %1489 = vmatpush1.msra.mxu0 0.0
    %1490 = vmatprep.subr.mxu0 0.0
    %1491 = vmatpush1.msra.mxu0 0.0
    %1492 = vmatprep.subr.mxu0 0.0
    %1493 = vmatpush1.msra.mxu0 0.0
    %1494 = vmatprep.subr.mxu0 0.0
    %1495 = vmatpush1.msra.mxu0 0.0
    %1496 = vmatprep.subr.mxu0 0.0
    %1497 = vmatpush1.msra.mxu0 0.0
    %1498 = vmatprep.subr.mxu0 0.0
    %1499 = vmatpush1.msra.mxu0 0.0
    %1500 = vmatprep.subr.mxu0 0.0
    %1501 = vmatpush1.msra.mxu0 0.0
    %1502 = vmatprep.subr.mxu0 0.0
    %1503 = vmatpush1.msra.mxu0 0.0
    %1504 = vmatprep.subr.mxu0 0.0
    %1505 = vmatpush1.msra.mxu0 0.0
    %1506 = vmatprep.subr.mxu0 0.0
    %1507 = vmatpush1.msra.mxu0 0.0
    %1508 = vmatprep.mubr.f32.mxu0 0.0
    %1509 = vmatmul.mubr.f32.gmra.mrb[0].mxu0 %v1362
    %v1510 = vpop.f32.mrb[0].mxu0
    %v1511 = vadd.f32 0.0, %v1510
    %v1512 = vpop.f32.mrb[0].mxu0
    %1513 = vdwg.mxu0
    %v1514 = vadd.f32 %v1346, %v1440
    %v1515 = vadd.f32 %v1347, %v1442
    %v1516 = vadd.f32 %v1348, %v1511
    %v1517 = vld [vmem:[%s2] sm:$0xff]
    %1519 = vset.pattern.permute.xlu0 0
    %1520 = vperm.xlu0 %1519, %v1517
    %v1521 = vpop.permute.xlu0 %1520
    %v1523 = vadd.f32 %v1514, %v1521
    %v1524 = vadd.f32 %v1515, %v1521
    %v1525 = vadd.f32 %v1516, %v1521
    %1526 = vst [vmem:[#allocation2] sm:$0xff] %v1523
    %1527 = vst [vmem:[#allocation2 + $0x8] sm:$0xff] %v1524
    %1528 = vst [vmem:[#allocation2 + $0x10] sm:$0xff] %v1525
    %s1529 = scalar_lea.vmem %s0, 12
    %v1530 = vld [vmem:[%s1529] sm:$0xff]
    %v1531 = vld [vmem:[%s1529 + $0x8] sm:$0xf]
    %v1532 = vld [vmem:[%s1] sm:$0xff]
    %v1535 = vcombine.high %v1530, %v1530
    %1537 = vrot.lane.b32.xlu0 %v1530, 127
    %v1538 = vpop.permute.xlu0 %1537
    %1539 = vrot.lane.b32.xlu0 %v1535, 127
    %v1540 = vpop.permute.xlu0 %1539
    %1541 = vrot.lane.b32.xlu0 %v1531, 127
    %v1542 = vpop.permute.xlu0 %1541
    %v1543 = vsel %vm30, %v1540, %v1542
    %v1544 = vsel %vm30, %v1538, %v1540
    %v1545 = vsel %vm30, %v1542, %v1538
    %v1546 = vld [vmem:[%s34] sm:$0xff]
    %v1548 = vsel %vm36, %v1546, 0
    %v1551 = vsel %vm40, %v1544, 0
    %v1554 = vsel %vm40, %v1543, 0
    %v1557 = vsel %vm40, %v1545, 0
    %1559 = vmatprep.subr.mxu0 %v1554
    %1560 = vmatpush1.msra.mxu0 %v1551
    %1561 = vmatprep.subr.mxu0 0.0
    %1562 = vmatpush1.msra.mxu0 0.0
    %1563 = vmatprep.subr.mxu0 0.0
    %1564 = vmatpush1.msra.mxu0 0.0
    %1565 = vmatprep.subr.mxu0 0.0
    %1566 = vmatpush1.msra.mxu0 0.0
    %1567 = vmatprep.subr.mxu0 0.0
    %1568 = vmatpush1.msra.mxu0 0.0
    %1569 = vmatprep.subr.mxu0 0.0
    %1570 = vmatpush1.msra.mxu0 0.0
    %1571 = vmatprep.subr.mxu0 0.0
    %1572 = vmatpush1.msra.mxu0 0.0
    %1573 = vmatprep.subr.mxu0 0.0
    %1574 = vmatpush1.msra.mxu0 0.0
    %1575 = vmatprep.subr.mxu0 0.0
    %1576 = vmatpush1.msra.mxu0 0.0
    %1577 = vmatprep.subr.mxu0 0.0
    %1578 = vmatpush1.msra.mxu0 0.0
    %1579 = vmatprep.subr.mxu0 0.0
    %1580 = vmatpush1.msra.mxu0 0.0
    %1581 = vmatprep.subr.mxu0 0.0
    %1582 = vmatpush1.msra.mxu0 0.0
    %1583 = vmatprep.subr.mxu0 0.0
    %1584 = vmatpush1.msra.mxu0 0.0
    %1585 = vmatprep.subr.mxu0 0.0
    %1586 = vmatpush1.msra.mxu0 0.0
    %1587 = vmatprep.subr.mxu0 0.0
    %1588 = vmatpush1.msra.mxu0 0.0
    %1589 = vmatprep.subr.mxu0 0.0
    %1590 = vmatpush1.msra.mxu0 0.0
    %1591 = vmatprep.subr.mxu0 0.0
    %1592 = vmatpush1.msra.mxu0 0.0
    %1593 = vmatprep.subr.mxu0 0.0
    %1594 = vmatpush1.msra.mxu0 0.0
    %1595 = vmatprep.subr.mxu0 0.0
    %1596 = vmatpush1.msra.mxu0 0.0
    %1597 = vmatprep.subr.mxu0 0.0
    %1598 = vmatpush1.msra.mxu0 0.0
    %1599 = vmatprep.subr.mxu0 0.0
    %1600 = vmatpush1.msra.mxu0 0.0
    %1601 = vmatprep.subr.mxu0 0.0
    %1602 = vmatpush1.msra.mxu0 0.0
    %1603 = vmatprep.subr.mxu0 0.0
    %1604 = vmatpush1.msra.mxu0 0.0
    %1605 = vmatprep.subr.mxu0 0.0
    %1606 = vmatpush1.msra.mxu0 0.0
    %1607 = vmatprep.subr.mxu0 0.0
    %1608 = vmatpush1.msra.mxu0 0.0
    %1609 = vmatprep.subr.mxu0 0.0
    %1610 = vmatpush1.msra.mxu0 0.0
    %1611 = vmatprep.subr.mxu0 0.0
    %1612 = vmatpush1.msra.mxu0 0.0
    %1613 = vmatprep.subr.mxu0 0.0
    %1614 = vmatpush1.msra.mxu0 0.0
    %1615 = vmatprep.subr.mxu0 0.0
    %1616 = vmatpush1.msra.mxu0 0.0
    %1617 = vmatprep.subr.mxu0 0.0
    %1618 = vmatpush1.msra.mxu0 0.0
    %1619 = vmatprep.subr.mxu0 0.0
    %1620 = vmatpush1.msra.mxu0 0.0
    %1621 = vmatprep.subr.mxu0 0.0
    %1622 = vmatpush1.msra.mxu0 0.0
    %1623 = vmatprep.mubr.f32.mxu0 0.0
    %1624 = vmatmul.mubr.f32.gmra.mrb[0].mxu0 %v1548
    %v1625 = vpop.f32.mrb[0].mxu0
    %v1626 = vadd.f32 0.0, %v1625
    %v1627 = vpop.f32.mrb[0].mxu0
    %v1628 = vadd.f32 0.0, %v1627
    %1629 = vdwg.mxu0
    %1630 = vmatprep.subr.mxu0 0.0
    %1631 = vmatpush1.msra.mxu0 %v1557
    %1632 = vmatprep.subr.mxu0 0.0
    %1633 = vmatpush1.msra.mxu0 0.0
    %1634 = vmatprep.subr.mxu0 0.0
    %1635 = vmatpush1.msra.mxu0 0.0
    %1636 = vmatprep.subr.mxu0 0.0
    %1637 = vmatpush1.msra.mxu0 0.0
    %1638 = vmatprep.subr.mxu0 0.0
    %1639 = vmatpush1.msra.mxu0 0.0
    %1640 = vmatprep.subr.mxu0 0.0
    %1641 = vmatpush1.msra.mxu0 0.0
    %1642 = vmatprep.subr.mxu0 0.0
    %1643 = vmatpush1.msra.mxu0 0.0
    %1644 = vmatprep.subr.mxu0 0.0
    %1645 = vmatpush1.msra.mxu0 0.0
    %1646 = vmatprep.subr.mxu0 0.0
    %1647 = vmatpush1.msra.mxu0 0.0
    %1648 = vmatprep.subr.mxu0 0.0
    %1649 = vmatpush1.msra.mxu0 0.0
    %1650 = vmatprep.subr.mxu0 0.0
    %1651 = vmatpush1.msra.mxu0 0.0
    %1652 = vmatprep.subr.mxu0 0.0
    %1653 = vmatpush1.msra.mxu0 0.0
    %1654 = vmatprep.subr.mxu0 0.0
    %1655 = vmatpush1.msra.mxu0 0.0
    %1656 = vmatprep.subr.mxu0 0.0
    %1657 = vmatpush1.msra.mxu0 0.0
    %1658 = vmatprep.subr.mxu0 0.0
    %1659 = vmatpush1.msra.mxu0 0.0
    %1660 = vmatprep.subr.mxu0 0.0
    %1661 = vmatpush1.msra.mxu0 0.0
    %1662 = vmatprep.subr.mxu0 0.0
    %1663 = vmatpush1.msra.mxu0 0.0
    %1664 = vmatprep.subr.mxu0 0.0
    %1665 = vmatpush1.msra.mxu0 0.0
    %1666 = vmatprep.subr.mxu0 0.0
    %1667 = vmatpush1.msra.mxu0 0.0
    %1668 = vmatprep.subr.mxu0 0.0
    %1669 = vmatpush1.msra.mxu0 0.0
    %1670 = vmatprep.subr.mxu0 0.0
    %1671 = vmatpush1.msra.mxu0 0.0
    %1672 = vmatprep.subr.mxu0 0.0
    %1673 = vmatpush1.msra.mxu0 0.0
    %1674 = vmatprep.subr.mxu0 0.0
    %1675 = vmatpush1.msra.mxu0 0.0
    %1676 = vmatprep.subr.mxu0 0.0
    %1677 = vmatpush1.msra.mxu0 0.0
    %1678 = vmatprep.subr.mxu0 0.0
    %1679 = vmatpush1.msra.mxu0 0.0
    %1680 = vmatprep.subr.mxu0 0.0
    %1681 = vmatpush1.msra.mxu0 0.0
    %1682 = vmatprep.subr.mxu0 0.0
    %1683 = vmatpush1.msra.mxu0 0.0
    %1684 = vmatprep.subr.mxu0 0.0
    %1685 = vmatpush1.msra.mxu0 0.0
    %1686 = vmatprep.subr.mxu0 0.0
    %1687 = vmatpush1.msra.mxu0 0.0
    %1688 = vmatprep.subr.mxu0 0.0
    %1689 = vmatpush1.msra.mxu0 0.0
    %1690 = vmatprep.subr.mxu0 0.0
    %1691 = vmatpush1.msra.mxu0 0.0
    %1692 = vmatprep.subr.mxu0 0.0
    %1693 = vmatpush1.msra.mxu0 0.0
    %1694 = vmatprep.mubr.f32.mxu0 0.0
    %1695 = vmatmul.mubr.f32.gmra.mrb[0].mxu0 %v1548
    %v1696 = vpop.f32.mrb[0].mxu0
    %v1697 = vadd.f32 0.0, %v1696
    %v1698 = vpop.f32.mrb[0].mxu0
    %1699 = vdwg.mxu0
    %v1701 = vsel %vm36, %v1532, 0
    %v1703 = vsel %vm40, %v1530, 0
    %v1705 = vsel %vm40, %v1535, 0
    %v1707 = vsel %vm40, %v1531, 0
    %1709 = vmatprep.subr.mxu0 %v1705
    %1710 = vmatpush1.msra.mxu0 %v1703
    %1711 = vmatprep.subr.mxu0 0.0
    %1712 = vmatpush1.msra.mxu0 0.0
    %1713 = vmatprep.subr.mxu0 0.0
    %1714 = vmatpush1.msra.mxu0 0.0
    %1715 = vmatprep.subr.mxu0 0.0
    %1716 = vmatpush1.msra.mxu0 0.0
    %1717 = vmatprep.subr.mxu0 0.0
    %1718 = vmatpush1.msra.mxu0 0.0
    %1719 = vmatprep.subr.mxu0 0.0
    %1720 = vmatpush1.msra.mxu0 0.0
    %1721 = vmatprep.subr.mxu0 0.0
    %1722 = vmatpush1.msra.mxu0 0.0
    %1723 = vmatprep.subr.mxu0 0.0
    %1724 = vmatpush1.msra.mxu0 0.0
    %1725 = vmatprep.subr.mxu0 0.0
    %1726 = vmatpush1.msra.mxu0 0.0
    %1727 = vmatprep.subr.mxu0 0.0
    %1728 = vmatpush1.msra.mxu0 0.0
    %1729 = vmatprep.subr.mxu0 0.0
    %1730 = vmatpush1.msra.mxu0 0.0
    %1731 = vmatprep.subr.mxu0 0.0
    %1732 = vmatpush1.msra.mxu0 0.0
    %1733 = vmatprep.subr.mxu0 0.0
    %1734 = vmatpush1.msra.mxu0 0.0
    %1735 = vmatprep.subr.mxu0 0.0
    %1736 = vmatpush1.msra.mxu0 0.0
    %1737 = vmatprep.subr.mxu0 0.0
    %1738 = vmatpush1.msra.mxu0 0.0
    %1739 = vmatprep.subr.mxu0 0.0
    %1740 = vmatpush1.msra.mxu0 0.0
    %1741 = vmatprep.subr.mxu0 0.0
    %1742 = vmatpush1.msra.mxu0 0.0
    %1743 = vmatprep.subr.mxu0 0.0
    %1744 = vmatpush1.msra.mxu0 0.0
    %1745 = vmatprep.subr.mxu0 0.0
    %1746 = vmatpush1.msra.mxu0 0.0
    %1747 = vmatprep.subr.mxu0 0.0
    %1748 = vmatpush1.msra.mxu0 0.0
    %1749 = vmatprep.subr.mxu0 0.0
    %1750 = vmatpush1.msra.mxu0 0.0
    %1751 = vmatprep.subr.mxu0 0.0
    %1752 = vmatpush1.msra.mxu0 0.0
    %1753 = vmatprep.subr.mxu0 0.0
    %1754 = vmatpush1.msra.mxu0 0.0
    %1755 = vmatprep.subr.mxu0 0.0
    %1756 = vmatpush1.msra.mxu0 0.0
    %1757 = vmatprep.subr.mxu0 0.0
    %1758 = vmatpush1.msra.mxu0 0.0
    %1759 = vmatprep.subr.mxu0 0.0
    %1760 = vmatpush1.msra.mxu0 0.0
    %1761 = vmatprep.subr.mxu0 0.0
    %1762 = vmatpush1.msra.mxu0 0.0
    %1763 = vmatprep.subr.mxu0 0.0
    %1764 = vmatpush1.msra.mxu0 0.0
    %1765 = vmatprep.subr.mxu0 0.0
    %1766 = vmatpush1.msra.mxu0 0.0
    %1767 = vmatprep.subr.mxu0 0.0
    %1768 = vmatpush1.msra.mxu0 0.0
    %1769 = vmatprep.subr.mxu0 0.0
    %1770 = vmatpush1.msra.mxu0 0.0
    %1771 = vmatprep.subr.mxu0 0.0
    %1772 = vmatpush1.msra.mxu0 0.0
    %1773 = vmatprep.mubr.f32.mxu0 0.0
    %1774 = vmatmul.mubr.f32.gmra.mrb[0].mxu0 %v1701
    %v1775 = vpop.f32.mrb[0].mxu0
    %v1776 = vadd.f32 %v1626, %v1775
    %v1777 = vpop.f32.mrb[0].mxu0
    %v1778 = vadd.f32 %v1628, %v1777
    %1779 = vdwg.mxu0
    %1780 = vmatprep.subr.mxu0 0.0
    %1781 = vmatpush1.msra.mxu0 %v1707
    %1782 = vmatprep.subr.mxu0 0.0
    %1783 = vmatpush1.msra.mxu0 0.0
    %1784 = vmatprep.subr.mxu0 0.0
    %1785 = vmatpush1.msra.mxu0 0.0
    %1786 = vmatprep.subr.mxu0 0.0
    %1787 = vmatpush1.msra.mxu0 0.0
    %1788 = vmatprep.subr.mxu0 0.0
    %1789 = vmatpush1.msra.mxu0 0.0
    %1790 = vmatprep.subr.mxu0 0.0
    %1791 = vmatpush1.msra.mxu0 0.0
    %1792 = vmatprep.subr.mxu0 0.0
    %1793 = vmatpush1.msra.mxu0 0.0
    %1794 = vmatprep.subr.mxu0 0.0
    %1795 = vmatpush1.msra.mxu0 0.0
    %1796 = vmatprep.subr.mxu0 0.0
    %1797 = vmatpush1.msra.mxu0 0.0
    %1798 = vmatprep.subr.mxu0 0.0
    %1799 = vmatpush1.msra.mxu0 0.0
    %1800 = vmatprep.subr.mxu0 0.0
    %1801 = vmatpush1.msra.mxu0 0.0
    %1802 = vmatprep.subr.mxu0 0.0
    %1803 = vmatpush1.msra.mxu0 0.0
    %1804 = vmatprep.subr.mxu0 0.0
    %1805 = vmatpush1.msra.mxu0 0.0
    %1806 = vmatprep.subr.mxu0 0.0
    %1807 = vmatpush1.msra.mxu0 0.0
    %1808 = vmatprep.subr.mxu0 0.0
    %1809 = vmatpush1.msra.mxu0 0.0
    %1810 = vmatprep.subr.mxu0 0.0
    %1811 = vmatpush1.msra.mxu0 0.0
    %1812 = vmatprep.subr.mxu0 0.0
    %1813 = vmatpush1.msra.mxu0 0.0
    %1814 = vmatprep.subr.mxu0 0.0
    %1815 = vmatpush1.msra.mxu0 0.0
    %1816 = vmatprep.subr.mxu0 0.0
    %1817 = vmatpush1.msra.mxu0 0.0
    %1818 = vmatprep.subr.mxu0 0.0
    %1819 = vmatpush1.msra.mxu0 0.0
    %1820 = vmatprep.subr.mxu0 0.0
    %1821 = vmatpush1.msra.mxu0 0.0
    %1822 = vmatprep.subr.mxu0 0.0
    %1823 = vmatpush1.msra.mxu0 0.0
    %1824 = vmatprep.subr.mxu0 0.0
    %1825 = vmatpush1.msra.mxu0 0.0
    %1826 = vmatprep.subr.mxu0 0.0
    %1827 = vmatpush1.msra.mxu0 0.0
    %1828 = vmatprep.subr.mxu0 0.0
    %1829 = vmatpush1.msra.mxu0 0.0
    %1830 = vmatprep.subr.mxu0 0.0
    %1831 = vmatpush1.msra.mxu0 0.0
    %1832 = vmatprep.subr.mxu0 0.0
    %1833 = vmatpush1.msra.mxu0 0.0
    %1834 = vmatprep.subr.mxu0 0.0
    %1835 = vmatpush1.msra.mxu0 0.0
    %1836 = vmatprep.subr.mxu0 0.0
    %1837 = vmatpush1.msra.mxu0 0.0
    %1838 = vmatprep.subr.mxu0 0.0
    %1839 = vmatpush1.msra.mxu0 0.0
    %1840 = vmatprep.subr.mxu0 0.0
    %1841 = vmatpush1.msra.mxu0 0.0
    %1842 = vmatprep.subr.mxu0 0.0
    %1843 = vmatpush1.msra.mxu0 0.0
    %1844 = vmatprep.mubr.f32.mxu0 0.0
    %1845 = vmatmul.mubr.f32.gmra.mrb[0].mxu0 %v1701
    %v1846 = vpop.f32.mrb[0].mxu0
    %v1847 = vadd.f32 %v1697, %v1846
    %v1848 = vpop.f32.mrb[0].mxu0
    %1849 = vdwg.mxu0
    %1850 = vrot.lane.b32.xlu0 %v1530, 126
    %v1851 = vpop.permute.xlu0 %1850
    %1852 = vrot.lane.b32.xlu0 %v1535, 126
    %v1853 = vpop.permute.xlu0 %1852
    %1854 = vrot.lane.b32.xlu0 %v1531, 126
    %v1855 = vpop.permute.xlu0 %1854
    %v1856 = vsel %vm347, %v1853, %v1855
    %v1857 = vsel %vm347, %v1851, %v1853
    %v1858 = vsel %vm347, %v1855, %v1851
    %v1859 = vld [vmem:[%s351] sm:$0xff]
    %v1861 = vsel %vm36, %v1859, 0
    %v1864 = vsel %vm40, %v1857, 0
    %v1867 = vsel %vm40, %v1856, 0
    %v1870 = vsel %vm40, %v1858, 0
    %1872 = vmatprep.subr.mxu0 %v1867
    %1873 = vmatpush1.msra.mxu0 %v1864
    %1874 = vmatprep.subr.mxu0 0.0
    %1875 = vmatpush1.msra.mxu0 0.0
    %1876 = vmatprep.subr.mxu0 0.0
    %1877 = vmatpush1.msra.mxu0 0.0
    %1878 = vmatprep.subr.mxu0 0.0
    %1879 = vmatpush1.msra.mxu0 0.0
    %1880 = vmatprep.subr.mxu0 0.0
    %1881 = vmatpush1.msra.mxu0 0.0
    %1882 = vmatprep.subr.mxu0 0.0
    %1883 = vmatpush1.msra.mxu0 0.0
    %1884 = vmatprep.subr.mxu0 0.0
    %1885 = vmatpush1.msra.mxu0 0.0
    %1886 = vmatprep.subr.mxu0 0.0
    %1887 = vmatpush1.msra.mxu0 0.0
    %1888 = vmatprep.subr.mxu0 0.0
    %1889 = vmatpush1.msra.mxu0 0.0
    %1890 = vmatprep.subr.mxu0 0.0
    %1891 = vmatpush1.msra.mxu0 0.0
    %1892 = vmatprep.subr.mxu0 0.0
    %1893 = vmatpush1.msra.mxu0 0.0
    %1894 = vmatprep.subr.mxu0 0.0
    %1895 = vmatpush1.msra.mxu0 0.0
    %1896 = vmatprep.subr.mxu0 0.0
    %1897 = vmatpush1.msra.mxu0 0.0
    %1898 = vmatprep.subr.mxu0 0.0
    %1899 = vmatpush1.msra.mxu0 0.0
    %1900 = vmatprep.subr.mxu0 0.0
    %1901 = vmatpush1.msra.mxu0 0.0
    %1902 = vmatprep.subr.mxu0 0.0
    %1903 = vmatpush1.msra.mxu0 0.0
    %1904 = vmatprep.subr.mxu0 0.0
    %1905 = vmatpush1.msra.mxu0 0.0
    %1906 = vmatprep.subr.mxu0 0.0
    %1907 = vmatpush1.msra.mxu0 0.0
    %1908 = vmatprep.subr.mxu0 0.0
    %1909 = vmatpush1.msra.mxu0 0.0
    %1910 = vmatprep.subr.mxu0 0.0
    %1911 = vmatpush1.msra.mxu0 0.0
    %1912 = vmatprep.subr.mxu0 0.0
    %1913 = vmatpush1.msra.mxu0 0.0
    %1914 = vmatprep.subr.mxu0 0.0
    %1915 = vmatpush1.msra.mxu0 0.0
    %1916 = vmatprep.subr.mxu0 0.0
    %1917 = vmatpush1.msra.mxu0 0.0
    %1918 = vmatprep.subr.mxu0 0.0
    %1919 = vmatpush1.msra.mxu0 0.0
    %1920 = vmatprep.subr.mxu0 0.0
    %1921 = vmatpush1.msra.mxu0 0.0
    %1922 = vmatprep.subr.mxu0 0.0
    %1923 = vmatpush1.msra.mxu0 0.0
    %1924 = vmatprep.subr.mxu0 0.0
    %1925 = vmatpush1.msra.mxu0 0.0
    %1926 = vmatprep.subr.mxu0 0.0
    %1927 = vmatpush1.msra.mxu0 0.0
    %1928 = vmatprep.subr.mxu0 0.0
    %1929 = vmatpush1.msra.mxu0 0.0
    %1930 = vmatprep.subr.mxu0 0.0
    %1931 = vmatpush1.msra.mxu0 0.0
    %1932 = vmatprep.subr.mxu0 0.0
    %1933 = vmatpush1.msra.mxu0 0.0
    %1934 = vmatprep.subr.mxu0 0.0
    %1935 = vmatpush1.msra.mxu0 0.0
    %1936 = vmatprep.mubr.f32.mxu0 0.0
    %1937 = vmatmul.mubr.f32.gmra.mrb[0].mxu0 %v1861
    %v1938 = vpop.f32.mrb[0].mxu0
    %v1939 = vadd.f32 0.0, %v1938
    %v1940 = vpop.f32.mrb[0].mxu0
    %v1941 = vadd.f32 0.0, %v1940
    %1942 = vdwg.mxu0
    %1943 = vmatprep.subr.mxu0 0.0
    %1944 = vmatpush1.msra.mxu0 %v1870
    %1945 = vmatprep.subr.mxu0 0.0
    %1946 = vmatpush1.msra.mxu0 0.0
    %1947 = vmatprep.subr.mxu0 0.0
    %1948 = vmatpush1.msra.mxu0 0.0
    %1949 = vmatprep.subr.mxu0 0.0
    %1950 = vmatpush1.msra.mxu0 0.0
    %1951 = vmatprep.subr.mxu0 0.0
    %1952 = vmatpush1.msra.mxu0 0.0
    %1953 = vmatprep.subr.mxu0 0.0
    %1954 = vmatpush1.msra.mxu0 0.0
    %1955 = vmatprep.subr.mxu0 0.0
    %1956 = vmatpush1.msra.mxu0 0.0
    %1957 = vmatprep.subr.mxu0 0.0
    %1958 = vmatpush1.msra.mxu0 0.0
    %1959 = vmatprep.subr.mxu0 0.0
    %1960 = vmatpush1.msra.mxu0 0.0
    %1961 = vmatprep.subr.mxu0 0.0
    %1962 = vmatpush1.msra.mxu0 0.0
    %1963 = vmatprep.subr.mxu0 0.0
    %1964 = vmatpush1.msra.mxu0 0.0
    %1965 = vmatprep.subr.mxu0 0.0
    %1966 = vmatpush1.msra.mxu0 0.0
    %1967 = vmatprep.subr.mxu0 0.0
    %1968 = vmatpush1.msra.mxu0 0.0
    %1969 = vmatprep.subr.mxu0 0.0
    %1970 = vmatpush1.msra.mxu0 0.0
    %1971 = vmatprep.subr.mxu0 0.0
    %1972 = vmatpush1.msra.mxu0 0.0
    %1973 = vmatprep.subr.mxu0 0.0
    %1974 = vmatpush1.msra.mxu0 0.0
    %1975 = vmatprep.subr.mxu0 0.0
    %1976 = vmatpush1.msra.mxu0 0.0
    %1977 = vmatprep.subr.mxu0 0.0
    %1978 = vmatpush1.msra.mxu0 0.0
    %1979 = vmatprep.subr.mxu0 0.0
    %1980 = vmatpush1.msra.mxu0 0.0
    %1981 = vmatprep.subr.mxu0 0.0
    %1982 = vmatpush1.msra.mxu0 0.0
    %1983 = vmatprep.subr.mxu0 0.0
    %1984 = vmatpush1.msra.mxu0 0.0
    %1985 = vmatprep.subr.mxu0 0.0
    %1986 = vmatpush1.msra.mxu0 0.0
    %1987 = vmatprep.subr.mxu0 0.0
    %1988 = vmatpush1.msra.mxu0 0.0
    %1989 = vmatprep.subr.mxu0 0.0
    %1990 = vmatpush1.msra.mxu0 0.0
    %1991 = vmatprep.subr.mxu0 0.0
    %1992 = vmatpush1.msra.mxu0 0.0
    %1993 = vmatprep.subr.mxu0 0.0
    %1994 = vmatpush1.msra.mxu0 0.0
    %1995 = vmatprep.subr.mxu0 0.0
    %1996 = vmatpush1.msra.mxu0 0.0
    %1997 = vmatprep.subr.mxu0 0.0
    %1998 = vmatpush1.msra.mxu0 0.0
    %1999 = vmatprep.subr.mxu0 0.0
    %2000 = vmatpush1.msra.mxu0 0.0
    %2001 = vmatprep.subr.mxu0 0.0
    %2002 = vmatpush1.msra.mxu0 0.0
    %2003 = vmatprep.subr.mxu0 0.0
    %2004 = vmatpush1.msra.mxu0 0.0
    %2005 = vmatprep.subr.mxu0 0.0
    %2006 = vmatpush1.msra.mxu0 0.0
    %2007 = vmatprep.mubr.f32.mxu0 0.0
    %2008 = vmatmul.mubr.f32.gmra.mrb[0].mxu0 %v1861
    %v2009 = vpop.f32.mrb[0].mxu0
    %v2010 = vadd.f32 0.0, %v2009
    %v2011 = vpop.f32.mrb[0].mxu0
    %2012 = vdwg.mxu0
    %v2013 = vadd.f32 %v1776, %v1939
    %v2014 = vadd.f32 %v1778, %v1941
    %v2015 = vadd.f32 %v1847, %v2010
    %2016 = vrot.lane.b32.xlu0 %v1530, 110
    %v2017 = vpop.permute.xlu0 %2016
    %2018 = vrot.lane.b32.xlu0 %v1535, 110
    %v2019 = vpop.permute.xlu0 %2018
    %2020 = vrot.lane.b32.xlu0 %v1531, 110
    %v2021 = vpop.permute.xlu0 %2020
    %v2022 = vsel %vm515, %v2019, %v2021
    %v2023 = vsel %vm515, %v2017, %v2019
    %v2024 = vsel %vm515, %v2021, %v2017
    %v2025 = vld [vmem:[%s519] sm:$0xff]
    %v2027 = vsel %vm36, %v2025, 0
    %v2030 = vsel %vm40, %v2023, 0
    %v2033 = vsel %vm40, %v2022, 0
    %v2036 = vsel %vm40, %v2024, 0
    %2038 = vmatprep.subr.mxu0 %v2033
    %2039 = vmatpush1.msra.mxu0 %v2030
    %2040 = vmatprep.subr.mxu0 0.0
    %2041 = vmatpush1.msra.mxu0 0.0
    %2042 = vmatprep.subr.mxu0 0.0
    %2043 = vmatpush1.msra.mxu0 0.0
    %2044 = vmatprep.subr.mxu0 0.0
    %2045 = vmatpush1.msra.mxu0 0.0
    %2046 = vmatprep.subr.mxu0 0.0
    %2047 = vmatpush1.msra.mxu0 0.0
    %2048 = vmatprep.subr.mxu0 0.0
    %2049 = vmatpush1.msra.mxu0 0.0
    %2050 = vmatprep.subr.mxu0 0.0
    %2051 = vmatpush1.msra.mxu0 0.0
    %2052 = vmatprep.subr.mxu0 0.0
    %2053 = vmatpush1.msra.mxu0 0.0
    %2054 = vmatprep.subr.mxu0 0.0
    %2055 = vmatpush1.msra.mxu0 0.0
    %2056 = vmatprep.subr.mxu0 0.0
    %2057 = vmatpush1.msra.mxu0 0.0
    %2058 = vmatprep.subr.mxu0 0.0
    %2059 = vmatpush1.msra.mxu0 0.0
    %2060 = vmatprep.subr.mxu0 0.0
    %2061 = vmatpush1.msra.mxu0 0.0
    %2062 = vmatprep.subr.mxu0 0.0
    %2063 = vmatpush1.msra.mxu0 0.0
    %2064 = vmatprep.subr.mxu0 0.0
    %2065 = vmatpush1.msra.mxu0 0.0
    %2066 = vmatprep.subr.mxu0 0.0
    %2067 = vmatpush1.msra.mxu0 0.0
    %2068 = vmatprep.subr.mxu0 0.0
    %2069 = vmatpush1.msra.mxu0 0.0
    %2070 = vmatprep.subr.mxu0 0.0
    %2071 = vmatpush1.msra.mxu0 0.0
    %2072 = vmatprep.subr.mxu0 0.0
    %2073 = vmatpush1.msra.mxu0 0.0
    %2074 = vmatprep.subr.mxu0 0.0
    %2075 = vmatpush1.msra.mxu0 0.0
    %2076 = vmatprep.subr.mxu0 0.0
    %2077 = vmatpush1.msra.mxu0 0.0
    %2078 = vmatprep.subr.mxu0 0.0
    %2079 = vmatpush1.msra.mxu0 0.0
    %2080 = vmatprep.subr.mxu0 0.0
    %2081 = vmatpush1.msra.mxu0 0.0
    %2082 = vmatprep.subr.mxu0 0.0
    %2083 = vmatpush1.msra.mxu0 0.0
    %2084 = vmatprep.subr.mxu0 0.0
    %2085 = vmatpush1.msra.mxu0 0.0
    %2086 = vmatprep.subr.mxu0 0.0
    %2087 = vmatpush1.msra.mxu0 0.0
    %2088 = vmatprep.subr.mxu0 0.0
    %2089 = vmatpush1.msra.mxu0 0.0
    %2090 = vmatprep.subr.mxu0 0.0
    %2091 = vmatpush1.msra.mxu0 0.0
    %2092 = vmatprep.subr.mxu0 0.0
    %2093 = vmatpush1.msra.mxu0 0.0
    %2094 = vmatprep.subr.mxu0 0.0
    %2095 = vmatpush1.msra.mxu0 0.0
    %2096 = vmatprep.subr.mxu0 0.0
    %2097 = vmatpush1.msra.mxu0 0.0
    %2098 = vmatprep.subr.mxu0 0.0
    %2099 = vmatpush1.msra.mxu0 0.0
    %2100 = vmatprep.subr.mxu0 0.0
    %2101 = vmatpush1.msra.mxu0 0.0
    %2102 = vmatprep.mubr.f32.mxu0 0.0
    %2103 = vmatmul.mubr.f32.gmra.mrb[0].mxu0 %v2027
    %v2104 = vpop.f32.mrb[0].mxu0
    %v2105 = vadd.f32 0.0, %v2104
    %v2106 = vpop.f32.mrb[0].mxu0
    %v2107 = vadd.f32 0.0, %v2106
    %2108 = vdwg.mxu0
    %2109 = vmatprep.subr.mxu0 0.0
    %2110 = vmatpush1.msra.mxu0 %v2036
    %2111 = vmatprep.subr.mxu0 0.0
    %2112 = vmatpush1.msra.mxu0 0.0
    %2113 = vmatprep.subr.mxu0 0.0
    %2114 = vmatpush1.msra.mxu0 0.0
    %2115 = vmatprep.subr.mxu0 0.0
    %2116 = vmatpush1.msra.mxu0 0.0
    %2117 = vmatprep.subr.mxu0 0.0
    %2118 = vmatpush1.msra.mxu0 0.0
    %2119 = vmatprep.subr.mxu0 0.0
    %2120 = vmatpush1.msra.mxu0 0.0
    %2121 = vmatprep.subr.mxu0 0.0
    %2122 = vmatpush1.msra.mxu0 0.0
    %2123 = vmatprep.subr.mxu0 0.0
    %2124 = vmatpush1.msra.mxu0 0.0
    %2125 = vmatprep.subr.mxu0 0.0
    %2126 = vmatpush1.msra.mxu0 0.0
    %2127 = vmatprep.subr.mxu0 0.0
    %2128 = vmatpush1.msra.mxu0 0.0
    %2129 = vmatprep.subr.mxu0 0.0
    %2130 = vmatpush1.msra.mxu0 0.0
    %2131 = vmatprep.subr.mxu0 0.0
    %2132 = vmatpush1.msra.mxu0 0.0
    %2133 = vmatprep.subr.mxu0 0.0
    %2134 = vmatpush1.msra.mxu0 0.0
    %2135 = vmatprep.subr.mxu0 0.0
    %2136 = vmatpush1.msra.mxu0 0.0
    %2137 = vmatprep.subr.mxu0 0.0
    %2138 = vmatpush1.msra.mxu0 0.0
    %2139 = vmatprep.subr.mxu0 0.0
    %2140 = vmatpush1.msra.mxu0 0.0
    %2141 = vmatprep.subr.mxu0 0.0
    %2142 = vmatpush1.msra.mxu0 0.0
    %2143 = vmatprep.subr.mxu0 0.0
    %2144 = vmatpush1.msra.mxu0 0.0
    %2145 = vmatprep.subr.mxu0 0.0
    %2146 = vmatpush1.msra.mxu0 0.0
    %2147 = vmatprep.subr.mxu0 0.0
    %2148 = vmatpush1.msra.mxu0 0.0
    %2149 = vmatprep.subr.mxu0 0.0
    %2150 = vmatpush1.msra.mxu0 0.0
    %2151 = vmatprep.subr.mxu0 0.0
    %2152 = vmatpush1.msra.mxu0 0.0
    %2153 = vmatprep.subr.mxu0 0.0
    %2154 = vmatpush1.msra.mxu0 0.0
    %2155 = vmatprep.subr.mxu0 0.0
    %2156 = vmatpush1.msra.mxu0 0.0
    %2157 = vmatprep.subr.mxu0 0.0
    %2158 = vmatpush1.msra.mxu0 0.0
    %2159 = vmatprep.subr.mxu0 0.0
    %2160 = vmatpush1.msra.mxu0 0.0
    %2161 = vmatprep.subr.mxu0 0.0
    %2162 = vmatpush1.msra.mxu0 0.0
    %2163 = vmatprep.subr.mxu0 0.0
    %2164 = vmatpush1.msra.mxu0 0.0
    %2165 = vmatprep.subr.mxu0 0.0
    %2166 = vmatpush1.msra.mxu0 0.0
    %2167 = vmatprep.subr.mxu0 0.0
    %2168 = vmatpush1.msra.mxu0 0.0
    %2169 = vmatprep.subr.mxu0 0.0
    %2170 = vmatpush1.msra.mxu0 0.0
    %2171 = vmatprep.subr.mxu0 0.0
    %2172 = vmatpush1.msra.mxu0 0.0
    %2173 = vmatprep.mubr.f32.mxu0 0.0
    %2174 = vmatmul.mubr.f32.gmra.mrb[0].mxu0 %v2027
    %v2175 = vpop.f32.mrb[0].mxu0
    %v2176 = vadd.f32 0.0, %v2175
    %v2177 = vpop.f32.mrb[0].mxu0
    %2178 = vdwg.mxu0
    %v2179 = vadd.f32 %v2013, %v2105
    %v2180 = vadd.f32 %v2014, %v2107
    %v2181 = vadd.f32 %v2015, %v2176
    %2182 = vrot.lane.b32.xlu0 %v1530, 109
    %v2183 = vpop.permute.xlu0 %2182
    %2184 = vrot.lane.b32.xlu0 %v1535, 109
    %v2185 = vpop.permute.xlu0 %2184
    %2186 = vrot.lane.b32.xlu0 %v1531, 109
    %v2187 = vpop.permute.xlu0 %2186
    %v2188 = vsel %vm683, %v2185, %v2187
    %v2189 = vsel %vm683, %v2183, %v2185
    %v2190 = vsel %vm683, %v2187, %v2183
    %v2191 = vld [vmem:[%s687] sm:$0xff]
    %v2193 = vsel %vm36, %v2191, 0
    %v2196 = vsel %vm40, %v2189, 0
    %v2199 = vsel %vm40, %v2188, 0
    %v2202 = vsel %vm40, %v2190, 0
    %2204 = vmatprep.subr.mxu0 %v2199
    %2205 = vmatpush1.msra.mxu0 %v2196
    %2206 = vmatprep.subr.mxu0 0.0
    %2207 = vmatpush1.msra.mxu0 0.0
    %2208 = vmatprep.subr.mxu0 0.0
    %2209 = vmatpush1.msra.mxu0 0.0
    %2210 = vmatprep.subr.mxu0 0.0
    %2211 = vmatpush1.msra.mxu0 0.0
    %2212 = vmatprep.subr.mxu0 0.0
    %2213 = vmatpush1.msra.mxu0 0.0
    %2214 = vmatprep.subr.mxu0 0.0
    %2215 = vmatpush1.msra.mxu0 0.0
    %2216 = vmatprep.subr.mxu0 0.0
    %2217 = vmatpush1.msra.mxu0 0.0
    %2218 = vmatprep.subr.mxu0 0.0
    %2219 = vmatpush1.msra.mxu0 0.0
    %2220 = vmatprep.subr.mxu0 0.0
    %2221 = vmatpush1.msra.mxu0 0.0
    %2222 = vmatprep.subr.mxu0 0.0
    %2223 = vmatpush1.msra.mxu0 0.0
    %2224 = vmatprep.subr.mxu0 0.0
    %2225 = vmatpush1.msra.mxu0 0.0
    %2226 = vmatprep.subr.mxu0 0.0
    %2227 = vmatpush1.msra.mxu0 0.0
    %2228 = vmatprep.subr.mxu0 0.0
    %2229 = vmatpush1.msra.mxu0 0.0
    %2230 = vmatprep.subr.mxu0 0.0
    %2231 = vmatpush1.msra.mxu0 0.0
    %2232 = vmatprep.subr.mxu0 0.0
    %2233 = vmatpush1.msra.mxu0 0.0
    %2234 = vmatprep.subr.mxu0 0.0
    %2235 = vmatpush1.msra.mxu0 0.0
    %2236 = vmatprep.subr.mxu0 0.0
    %2237 = vmatpush1.msra.mxu0 0.0
    %2238 = vmatprep.subr.mxu0 0.0
    %2239 = vmatpush1.msra.mxu0 0.0
    %2240 = vmatprep.subr.mxu0 0.0
    %2241 = vmatpush1.msra.mxu0 0.0
    %2242 = vmatprep.subr.mxu0 0.0
    %2243 = vmatpush1.msra.mxu0 0.0
    %2244 = vmatprep.subr.mxu0 0.0
    %2245 = vmatpush1.msra.mxu0 0.0
    %2246 = vmatprep.subr.mxu0 0.0
    %2247 = vmatpush1.msra.mxu0 0.0
    %2248 = vmatprep.subr.mxu0 0.0
    %2249 = vmatpush1.msra.mxu0 0.0
    %2250 = vmatprep.subr.mxu0 0.0
    %2251 = vmatpush1.msra.mxu0 0.0
    %2252 = vmatprep.subr.mxu0 0.0
    %2253 = vmatpush1.msra.mxu0 0.0
    %2254 = vmatprep.subr.mxu0 0.0
    %2255 = vmatpush1.msra.mxu0 0.0
    %2256 = vmatprep.subr.mxu0 0.0
    %2257 = vmatpush1.msra.mxu0 0.0
    %2258 = vmatprep.subr.mxu0 0.0
    %2259 = vmatpush1.msra.mxu0 0.0
    %2260 = vmatprep.subr.mxu0 0.0
    %2261 = vmatpush1.msra.mxu0 0.0
    %2262 = vmatprep.subr.mxu0 0.0
    %2263 = vmatpush1.msra.mxu0 0.0
    %2264 = vmatprep.subr.mxu0 0.0
    %2265 = vmatpush1.msra.mxu0 0.0
    %2266 = vmatprep.subr.mxu0 0.0
    %2267 = vmatpush1.msra.mxu0 0.0
    %2268 = vmatprep.mubr.f32.mxu0 0.0
    %2269 = vmatmul.mubr.f32.gmra.mrb[0].mxu0 %v2193
    %v2270 = vpop.f32.mrb[0].mxu0
    %v2271 = vadd.f32 0.0, %v2270
    %v2272 = vpop.f32.mrb[0].mxu0
    %v2273 = vadd.f32 0.0, %v2272
    %2274 = vdwg.mxu0
    %2275 = vmatprep.subr.mxu0 0.0
    %2276 = vmatpush1.msra.mxu0 %v2202
    %2277 = vmatprep.subr.mxu0 0.0
    %2278 = vmatpush1.msra.mxu0 0.0
    %2279 = vmatprep.subr.mxu0 0.0
    %2280 = vmatpush1.msra.mxu0 0.0
    %2281 = vmatprep.subr.mxu0 0.0
    %2282 = vmatpush1.msra.mxu0 0.0
    %2283 = vmatprep.subr.mxu0 0.0
    %2284 = vmatpush1.msra.mxu0 0.0
    %2285 = vmatprep.subr.mxu0 0.0
    %2286 = vmatpush1.msra.mxu0 0.0
    %2287 = vmatprep.subr.mxu0 0.0
    %2288 = vmatpush1.msra.mxu0 0.0
    %2289 = vmatprep.subr.mxu0 0.0
    %2290 = vmatpush1.msra.mxu0 0.0
    %2291 = vmatprep.subr.mxu0 0.0
    %2292 = vmatpush1.msra.mxu0 0.0
    %2293 = vmatprep.subr.mxu0 0.0
    %2294 = vmatpush1.msra.mxu0 0.0
    %2295 = vmatprep.subr.mxu0 0.0
    %2296 = vmatpush1.msra.mxu0 0.0
    %2297 = vmatprep.subr.mxu0 0.0
    %2298 = vmatpush1.msra.mxu0 0.0
    %2299 = vmatprep.subr.mxu0 0.0
    %2300 = vmatpush1.msra.mxu0 0.0
    %2301 = vmatprep.subr.mxu0 0.0
    %2302 = vmatpush1.msra.mxu0 0.0
    %2303 = vmatprep.subr.mxu0 0.0
    %2304 = vmatpush1.msra.mxu0 0.0
    %2305 = vmatprep.subr.mxu0 0.0
    %2306 = vmatpush1.msra.mxu0 0.0
    %2307 = vmatprep.subr.mxu0 0.0
    %2308 = vmatpush1.msra.mxu0 0.0
    %2309 = vmatprep.subr.mxu0 0.0
    %2310 = vmatpush1.msra.mxu0 0.0
    %2311 = vmatprep.subr.mxu0 0.0
    %2312 = vmatpush1.msra.mxu0 0.0
    %2313 = vmatprep.subr.mxu0 0.0
    %2314 = vmatpush1.msra.mxu0 0.0
    %2315 = vmatprep.subr.mxu0 0.0
    %2316 = vmatpush1.msra.mxu0 0.0
    %2317 = vmatprep.subr.mxu0 0.0
    %2318 = vmatpush1.msra.mxu0 0.0
    %2319 = vmatprep.subr.mxu0 0.0
    %2320 = vmatpush1.msra.mxu0 0.0
    %2321 = vmatprep.subr.mxu0 0.0
    %2322 = vmatpush1.msra.mxu0 0.0
    %2323 = vmatprep.subr.mxu0 0.0
    %2324 = vmatpush1.msra.mxu0 0.0
    %2325 = vmatprep.subr.mxu0 0.0
    %2326 = vmatpush1.msra.mxu0 0.0
    %2327 = vmatprep.subr.mxu0 0.0
    %2328 = vmatpush1.msra.mxu0 0.0
    %2329 = vmatprep.subr.mxu0 0.0
    %2330 = vmatpush1.msra.mxu0 0.0
    %2331 = vmatprep.subr.mxu0 0.0
    %2332 = vmatpush1.msra.mxu0 0.0
    %2333 = vmatprep.subr.mxu0 0.0
    %2334 = vmatpush1.msra.mxu0 0.0
    %2335 = vmatprep.subr.mxu0 0.0
    %2336 = vmatpush1.msra.mxu0 0.0
    %2337 = vmatprep.subr.mxu0 0.0
    %2338 = vmatpush1.msra.mxu0 0.0
    %2339 = vmatprep.mubr.f32.mxu0 0.0
    %2340 = vmatmul.mubr.f32.gmra.mrb[0].mxu0 %v2193
    %v2341 = vpop.f32.mrb[0].mxu0
    %v2342 = vadd.f32 0.0, %v2341
    %v2343 = vpop.f32.mrb[0].mxu0
    %2344 = vdwg.mxu0
    %v2345 = vadd.f32 %v2179, %v2271
    %v2346 = vadd.f32 %v2180, %v2273
    %v2347 = vadd.f32 %v2181, %v2342
    %2348 = vrot.lane.b32.xlu0 %v1530, 108
    %v2349 = vpop.permute.xlu0 %2348
    %2350 = vrot.lane.b32.xlu0 %v1535, 108
    %v2351 = vpop.permute.xlu0 %2350
    %2352 = vrot.lane.b32.xlu0 %v1531, 108
    %v2353 = vpop.permute.xlu0 %2352
    %v2354 = vsel %vm851, %v2351, %v2353
    %v2355 = vsel %vm851, %v2349, %v2351
    %v2356 = vsel %vm851, %v2353, %v2349
    %v2357 = vld [vmem:[%s855] sm:$0xff]
    %v2359 = vsel %vm36, %v2357, 0
    %v2362 = vsel %vm40, %v2355, 0
    %v2365 = vsel %vm40, %v2354, 0
    %v2368 = vsel %vm40, %v2356, 0
    %2370 = vmatprep.subr.mxu0 %v2365
    %2371 = vmatpush1.msra.mxu0 %v2362
    %2372 = vmatprep.subr.mxu0 0.0
    %2373 = vmatpush1.msra.mxu0 0.0
    %2374 = vmatprep.subr.mxu0 0.0
    %2375 = vmatpush1.msra.mxu0 0.0
    %2376 = vmatprep.subr.mxu0 0.0
    %2377 = vmatpush1.msra.mxu0 0.0
    %2378 = vmatprep.subr.mxu0 0.0
    %2379 = vmatpush1.msra.mxu0 0.0
    %2380 = vmatprep.subr.mxu0 0.0
    %2381 = vmatpush1.msra.mxu0 0.0
    %2382 = vmatprep.subr.mxu0 0.0
    %2383 = vmatpush1.msra.mxu0 0.0
    %2384 = vmatprep.subr.mxu0 0.0
    %2385 = vmatpush1.msra.mxu0 0.0
    %2386 = vmatprep.subr.mxu0 0.0
    %2387 = vmatpush1.msra.mxu0 0.0
    %2388 = vmatprep.subr.mxu0 0.0
    %2389 = vmatpush1.msra.mxu0 0.0
    %2390 = vmatprep.subr.mxu0 0.0
    %2391 = vmatpush1.msra.mxu0 0.0
    %2392 = vmatprep.subr.mxu0 0.0
    %2393 = vmatpush1.msra.mxu0 0.0
    %2394 = vmatprep.subr.mxu0 0.0
    %2395 = vmatpush1.msra.mxu0 0.0
    %2396 = vmatprep.subr.mxu0 0.0
    %2397 = vmatpush1.msra.mxu0 0.0
    %2398 = vmatprep.subr.mxu0 0.0
    %2399 = vmatpush1.msra.mxu0 0.0
    %2400 = vmatprep.subr.mxu0 0.0
    %2401 = vmatpush1.msra.mxu0 0.0
    %2402 = vmatprep.subr.mxu0 0.0
    %2403 = vmatpush1.msra.mxu0 0.0
    %2404 = vmatprep.subr.mxu0 0.0
    %2405 = vmatpush1.msra.mxu0 0.0
    %2406 = vmatprep.subr.mxu0 0.0
    %2407 = vmatpush1.msra.mxu0 0.0
    %2408 = vmatprep.subr.mxu0 0.0
    %2409 = vmatpush1.msra.mxu0 0.0
    %2410 = vmatprep.subr.mxu0 0.0
    %2411 = vmatpush1.msra.mxu0 0.0
    %2412 = vmatprep.subr.mxu0 0.0
    %2413 = vmatpush1.msra.mxu0 0.0
    %2414 = vmatprep.subr.mxu0 0.0
    %2415 = vmatpush1.msra.mxu0 0.0
    %2416 = vmatprep.subr.mxu0 0.0
    %2417 = vmatpush1.msra.mxu0 0.0
    %2418 = vmatprep.subr.mxu0 0.0
    %2419 = vmatpush1.msra.mxu0 0.0
    %2420 = vmatprep.subr.mxu0 0.0
    %2421 = vmatpush1.msra.mxu0 0.0
    %2422 = vmatprep.subr.mxu0 0.0
    %2423 = vmatpush1.msra.mxu0 0.0
    %2424 = vmatprep.subr.mxu0 0.0
    %2425 = vmatpush1.msra.mxu0 0.0
    %2426 = vmatprep.subr.mxu0 0.0
    %2427 = vmatpush1.msra.mxu0 0.0
    %2428 = vmatprep.subr.mxu0 0.0
    %2429 = vmatpush1.msra.mxu0 0.0
    %2430 = vmatprep.subr.mxu0 0.0
    %2431 = vmatpush1.msra.mxu0 0.0
    %2432 = vmatprep.subr.mxu0 0.0
    %2433 = vmatpush1.msra.mxu0 0.0
    %2434 = vmatprep.mubr.f32.mxu0 0.0
    %2435 = vmatmul.mubr.f32.gmra.mrb[0].mxu0 %v2359
    %v2436 = vpop.f32.mrb[0].mxu0
    %v2437 = vadd.f32 0.0, %v2436
    %v2438 = vpop.f32.mrb[0].mxu0
    %v2439 = vadd.f32 0.0, %v2438
    %2440 = vdwg.mxu0
    %2441 = vmatprep.subr.mxu0 0.0
    %2442 = vmatpush1.msra.mxu0 %v2368
    %2443 = vmatprep.subr.mxu0 0.0
    %2444 = vmatpush1.msra.mxu0 0.0
    %2445 = vmatprep.subr.mxu0 0.0
    %2446 = vmatpush1.msra.mxu0 0.0
    %2447 = vmatprep.subr.mxu0 0.0
    %2448 = vmatpush1.msra.mxu0 0.0
    %2449 = vmatprep.subr.mxu0 0.0
    %2450 = vmatpush1.msra.mxu0 0.0
    %2451 = vmatprep.subr.mxu0 0.0
    %2452 = vmatpush1.msra.mxu0 0.0
    %2453 = vmatprep.subr.mxu0 0.0
    %2454 = vmatpush1.msra.mxu0 0.0
    %2455 = vmatprep.subr.mxu0 0.0
    %2456 = vmatpush1.msra.mxu0 0.0
    %2457 = vmatprep.subr.mxu0 0.0
    %2458 = vmatpush1.msra.mxu0 0.0
    %2459 = vmatprep.subr.mxu0 0.0
    %2460 = vmatpush1.msra.mxu0 0.0
    %2461 = vmatprep.subr.mxu0 0.0
    %2462 = vmatpush1.msra.mxu0 0.0
    %2463 = vmatprep.subr.mxu0 0.0
    %2464 = vmatpush1.msra.mxu0 0.0
    %2465 = vmatprep.subr.mxu0 0.0
    %2466 = vmatpush1.msra.mxu0 0.0
    %2467 = vmatprep.subr.mxu0 0.0
    %2468 = vmatpush1.msra.mxu0 0.0
    %2469 = vmatprep.subr.mxu0 0.0
    %2470 = vmatpush1.msra.mxu0 0.0
    %2471 = vmatprep.subr.mxu0 0.0
    %2472 = vmatpush1.msra.mxu0 0.0
    %2473 = vmatprep.subr.mxu0 0.0
    %2474 = vmatpush1.msra.mxu0 0.0
    %2475 = vmatprep.subr.mxu0 0.0
    %2476 = vmatpush1.msra.mxu0 0.0
    %2477 = vmatprep.subr.mxu0 0.0
    %2478 = vmatpush1.msra.mxu0 0.0
    %2479 = vmatprep.subr.mxu0 0.0
    %2480 = vmatpush1.msra.mxu0 0.0
    %2481 = vmatprep.subr.mxu0 0.0
    %2482 = vmatpush1.msra.mxu0 0.0
    %2483 = vmatprep.subr.mxu0 0.0
    %2484 = vmatpush1.msra.mxu0 0.0
    %2485 = vmatprep.subr.mxu0 0.0
    %2486 = vmatpush1.msra.mxu0 0.0
    %2487 = vmatprep.subr.mxu0 0.0
    %2488 = vmatpush1.msra.mxu0 0.0
    %2489 = vmatprep.subr.mxu0 0.0
    %2490 = vmatpush1.msra.mxu0 0.0
    %2491 = vmatprep.subr.mxu0 0.0
    %2492 = vmatpush1.msra.mxu0 0.0
    %2493 = vmatprep.subr.mxu0 0.0
    %2494 = vmatpush1.msra.mxu0 0.0
    %2495 = vmatprep.subr.mxu0 0.0
    %2496 = vmatpush1.msra.mxu0 0.0
    %2497 = vmatprep.subr.mxu0 0.0
    %2498 = vmatpush1.msra.mxu0 0.0
    %2499 = vmatprep.subr.mxu0 0.0
    %2500 = vmatpush1.msra.mxu0 0.0
    %2501 = vmatprep.subr.mxu0 0.0
    %2502 = vmatpush1.msra.mxu0 0.0
    %2503 = vmatprep.subr.mxu0 0.0
    %2504 = vmatpush1.msra.mxu0 0.0
    %2505 = vmatprep.mubr.f32.mxu0 0.0
    %2506 = vmatmul.mubr.f32.gmra.mrb[0].mxu0 %v2359
    %v2507 = vpop.f32.mrb[0].mxu0
    %v2508 = vadd.f32 0.0, %v2507
    %v2509 = vpop.f32.mrb[0].mxu0
    %2510 = vdwg.mxu0
    %v2511 = vadd.f32 %v2345, %v2437
    %v2512 = vadd.f32 %v2346, %v2439
    %v2513 = vadd.f32 %v2347, %v2508
    %2514 = vrot.lane.b32.xlu0 %v1530, 92
    %v2515 = vpop.permute.xlu0 %2514
    %2516 = vrot.lane.b32.xlu0 %v1535, 92
    %v2517 = vpop.permute.xlu0 %2516
    %2518 = vrot.lane.b32.xlu0 %v1531, 92
    %v2519 = vpop.permute.xlu0 %2518
    %v2520 = vsel %vm1019, %v2517, %v2519
    %v2521 = vsel %vm1019, %v2515, %v2517
    %v2522 = vsel %vm1019, %v2519, %v2515
    %v2523 = vld [vmem:[%s1023] sm:$0xff]
    %v2525 = vsel %vm36, %v2523, 0
    %v2528 = vsel %vm40, %v2521, 0
    %v2531 = vsel %vm40, %v2520, 0
    %v2534 = vsel %vm40, %v2522, 0
    %2536 = vmatprep.subr.mxu0 %v2531
    %2537 = vmatpush1.msra.mxu0 %v2528
    %2538 = vmatprep.subr.mxu0 0.0
    %2539 = vmatpush1.msra.mxu0 0.0
    %2540 = vmatprep.subr.mxu0 0.0
    %2541 = vmatpush1.msra.mxu0 0.0
    %2542 = vmatprep.subr.mxu0 0.0
    %2543 = vmatpush1.msra.mxu0 0.0
    %2544 = vmatprep.subr.mxu0 0.0
    %2545 = vmatpush1.msra.mxu0 0.0
    %2546 = vmatprep.subr.mxu0 0.0
    %2547 = vmatpush1.msra.mxu0 0.0
    %2548 = vmatprep.subr.mxu0 0.0
    %2549 = vmatpush1.msra.mxu0 0.0
    %2550 = vmatprep.subr.mxu0 0.0
    %2551 = vmatpush1.msra.mxu0 0.0
    %2552 = vmatprep.subr.mxu0 0.0
    %2553 = vmatpush1.msra.mxu0 0.0
    %2554 = vmatprep.subr.mxu0 0.0
    %2555 = vmatpush1.msra.mxu0 0.0
    %2556 = vmatprep.subr.mxu0 0.0
    %2557 = vmatpush1.msra.mxu0 0.0
    %2558 = vmatprep.subr.mxu0 0.0
    %2559 = vmatpush1.msra.mxu0 0.0
    %2560 = vmatprep.subr.mxu0 0.0
    %2561 = vmatpush1.msra.mxu0 0.0
    %2562 = vmatprep.subr.mxu0 0.0
    %2563 = vmatpush1.msra.mxu0 0.0
    %2564 = vmatprep.subr.mxu0 0.0
    %2565 = vmatpush1.msra.mxu0 0.0
    %2566 = vmatprep.subr.mxu0 0.0
    %2567 = vmatpush1.msra.mxu0 0.0
    %2568 = vmatprep.subr.mxu0 0.0
    %2569 = vmatpush1.msra.mxu0 0.0
    %2570 = vmatprep.subr.mxu0 0.0
    %2571 = vmatpush1.msra.mxu0 0.0
    %2572 = vmatprep.subr.mxu0 0.0
    %2573 = vmatpush1.msra.mxu0 0.0
    %2574 = vmatprep.subr.mxu0 0.0
    %2575 = vmatpush1.msra.mxu0 0.0
    %2576 = vmatprep.subr.mxu0 0.0
    %2577 = vmatpush1.msra.mxu0 0.0
    %2578 = vmatprep.subr.mxu0 0.0
    %2579 = vmatpush1.msra.mxu0 0.0
    %2580 = vmatprep.subr.mxu0 0.0
    %2581 = vmatpush1.msra.mxu0 0.0
    %2582 = vmatprep.subr.mxu0 0.0
    %2583 = vmatpush1.msra.mxu0 0.0
    %2584 = vmatprep.subr.mxu0 0.0
    %2585 = vmatpush1.msra.mxu0 0.0
    %2586 = vmatprep.subr.mxu0 0.0
    %2587 = vmatpush1.msra.mxu0 0.0
    %2588 = vmatprep.subr.mxu0 0.0
    %2589 = vmatpush1.msra.mxu0 0.0
    %2590 = vmatprep.subr.mxu0 0.0
    %2591 = vmatpush1.msra.mxu0 0.0
    %2592 = vmatprep.subr.mxu0 0.0
    %2593 = vmatpush1.msra.mxu0 0.0
    %2594 = vmatprep.subr.mxu0 0.0
    %2595 = vmatpush1.msra.mxu0 0.0
    %2596 = vmatprep.subr.mxu0 0.0
    %2597 = vmatpush1.msra.mxu0 0.0
    %2598 = vmatprep.subr.mxu0 0.0
    %2599 = vmatpush1.msra.mxu0 0.0
    %2600 = vmatprep.mubr.f32.mxu0 0.0
    %2601 = vmatmul.mubr.f32.gmra.mrb[0].mxu0 %v2525
    %v2602 = vpop.f32.mrb[0].mxu0
    %v2603 = vadd.f32 0.0, %v2602
    %v2604 = vpop.f32.mrb[0].mxu0
    %v2605 = vadd.f32 0.0, %v2604
    %2606 = vdwg.mxu0
    %2607 = vmatprep.subr.mxu0 0.0
    %2608 = vmatpush1.msra.mxu0 %v2534
    %2609 = vmatprep.subr.mxu0 0.0
    %2610 = vmatpush1.msra.mxu0 0.0
    %2611 = vmatprep.subr.mxu0 0.0
    %2612 = vmatpush1.msra.mxu0 0.0
    %2613 = vmatprep.subr.mxu0 0.0
    %2614 = vmatpush1.msra.mxu0 0.0
    %2615 = vmatprep.subr.mxu0 0.0
    %2616 = vmatpush1.msra.mxu0 0.0
    %2617 = vmatprep.subr.mxu0 0.0
    %2618 = vmatpush1.msra.mxu0 0.0
    %2619 = vmatprep.subr.mxu0 0.0
    %2620 = vmatpush1.msra.mxu0 0.0
    %2621 = vmatprep.subr.mxu0 0.0
    %2622 = vmatpush1.msra.mxu0 0.0
    %2623 = vmatprep.subr.mxu0 0.0
    %2624 = vmatpush1.msra.mxu0 0.0
    %2625 = vmatprep.subr.mxu0 0.0
    %2626 = vmatpush1.msra.mxu0 0.0
    %2627 = vmatprep.subr.mxu0 0.0
    %2628 = vmatpush1.msra.mxu0 0.0
    %2629 = vmatprep.subr.mxu0 0.0
    %2630 = vmatpush1.msra.mxu0 0.0
    %2631 = vmatprep.subr.mxu0 0.0
    %2632 = vmatpush1.msra.mxu0 0.0
    %2633 = vmatprep.subr.mxu0 0.0
    %2634 = vmatpush1.msra.mxu0 0.0
    %2635 = vmatprep.subr.mxu0 0.0
    %2636 = vmatpush1.msra.mxu0 0.0
    %2637 = vmatprep.subr.mxu0 0.0
    %2638 = vmatpush1.msra.mxu0 0.0
    %2639 = vmatprep.subr.mxu0 0.0
    %2640 = vmatpush1.msra.mxu0 0.0
    %2641 = vmatprep.subr.mxu0 0.0
    %2642 = vmatpush1.msra.mxu0 0.0
    %2643 = vmatprep.subr.mxu0 0.0
    %2644 = vmatpush1.msra.mxu0 0.0
    %2645 = vmatprep.subr.mxu0 0.0
    %2646 = vmatpush1.msra.mxu0 0.0
    %2647 = vmatprep.subr.mxu0 0.0
    %2648 = vmatpush1.msra.mxu0 0.0
    %2649 = vmatprep.subr.mxu0 0.0
    %2650 = vmatpush1.msra.mxu0 0.0
    %2651 = vmatprep.subr.mxu0 0.0
    %2652 = vmatpush1.msra.mxu0 0.0
    %2653 = vmatprep.subr.mxu0 0.0
    %2654 = vmatpush1.msra.mxu0 0.0
    %2655 = vmatprep.subr.mxu0 0.0
    %2656 = vmatpush1.msra.mxu0 0.0
    %2657 = vmatprep.subr.mxu0 0.0
    %2658 = vmatpush1.msra.mxu0 0.0
    %2659 = vmatprep.subr.mxu0 0.0
    %2660 = vmatpush1.msra.mxu0 0.0
    %2661 = vmatprep.subr.mxu0 0.0
    %2662 = vmatpush1.msra.mxu0 0.0
    %2663 = vmatprep.subr.mxu0 0.0
    %2664 = vmatpush1.msra.mxu0 0.0
    %2665 = vmatprep.subr.mxu0 0.0
    %2666 = vmatpush1.msra.mxu0 0.0
    %2667 = vmatprep.subr.mxu0 0.0
    %2668 = vmatpush1.msra.mxu0 0.0
    %2669 = vmatprep.subr.mxu0 0.0
    %2670 = vmatpush1.msra.mxu0 0.0
    %2671 = vmatprep.mubr.f32.mxu0 0.0
    %2672 = vmatmul.mubr.f32.gmra.mrb[0].mxu0 %v2525
    %v2673 = vpop.f32.mrb[0].mxu0
    %v2674 = vadd.f32 0.0, %v2673
    %v2675 = vpop.f32.mrb[0].mxu0
    %2676 = vdwg.mxu0
    %v2677 = vadd.f32 %v2511, %v2603
    %v2678 = vadd.f32 %v2512, %v2605
    %v2679 = vadd.f32 %v2513, %v2674
    %2680 = vrot.lane.b32.xlu0 %v1530, 91
    %v2681 = vpop.permute.xlu0 %2680
    %2682 = vrot.lane.b32.xlu0 %v1535, 91
    %v2683 = vpop.permute.xlu0 %2682
    %2684 = vrot.lane.b32.xlu0 %v1531, 91
    %v2685 = vpop.permute.xlu0 %2684
    %v2686 = vsel %vm1187, %v2683, %v2685
    %v2687 = vsel %vm1187, %v2681, %v2683
    %v2688 = vsel %vm1187, %v2685, %v2681
    %v2689 = vld [vmem:[%s1191] sm:$0xff]
    %v2691 = vsel %vm36, %v2689, 0
    %v2694 = vsel %vm40, %v2687, 0
    %v2697 = vsel %vm40, %v2686, 0
    %v2700 = vsel %vm40, %v2688, 0
    %2702 = vmatprep.subr.mxu0 %v2697
    %2703 = vmatpush1.msra.mxu0 %v2694
    %2704 = vmatprep.subr.mxu0 0.0
    %2705 = vmatpush1.msra.mxu0 0.0
    %2706 = vmatprep.subr.mxu0 0.0
    %2707 = vmatpush1.msra.mxu0 0.0
    %2708 = vmatprep.subr.mxu0 0.0
    %2709 = vmatpush1.msra.mxu0 0.0
    %2710 = vmatprep.subr.mxu0 0.0
    %2711 = vmatpush1.msra.mxu0 0.0
    %2712 = vmatprep.subr.mxu0 0.0
    %2713 = vmatpush1.msra.mxu0 0.0
    %2714 = vmatprep.subr.mxu0 0.0
    %2715 = vmatpush1.msra.mxu0 0.0
    %2716 = vmatprep.subr.mxu0 0.0
    %2717 = vmatpush1.msra.mxu0 0.0
    %2718 = vmatprep.subr.mxu0 0.0
    %2719 = vmatpush1.msra.mxu0 0.0
    %2720 = vmatprep.subr.mxu0 0.0
    %2721 = vmatpush1.msra.mxu0 0.0
    %2722 = vmatprep.subr.mxu0 0.0
    %2723 = vmatpush1.msra.mxu0 0.0
    %2724 = vmatprep.subr.mxu0 0.0
    %2725 = vmatpush1.msra.mxu0 0.0
    %2726 = vmatprep.subr.mxu0 0.0
    %2727 = vmatpush1.msra.mxu0 0.0
    %2728 = vmatprep.subr.mxu0 0.0
    %2729 = vmatpush1.msra.mxu0 0.0
    %2730 = vmatprep.subr.mxu0 0.0
    %2731 = vmatpush1.msra.mxu0 0.0
    %2732 = vmatprep.subr.mxu0 0.0
    %2733 = vmatpush1.msra.mxu0 0.0
    %2734 = vmatprep.subr.mxu0 0.0
    %2735 = vmatpush1.msra.mxu0 0.0
    %2736 = vmatprep.subr.mxu0 0.0
    %2737 = vmatpush1.msra.mxu0 0.0
    %2738 = vmatprep.subr.mxu0 0.0
    %2739 = vmatpush1.msra.mxu0 0.0
    %2740 = vmatprep.subr.mxu0 0.0
    %2741 = vmatpush1.msra.mxu0 0.0
    %2742 = vmatprep.subr.mxu0 0.0
    %2743 = vmatpush1.msra.mxu0 0.0
    %2744 = vmatprep.subr.mxu0 0.0
    %2745 = vmatpush1.msra.mxu0 0.0
    %2746 = vmatprep.subr.mxu0 0.0
    %2747 = vmatpush1.msra.mxu0 0.0
    %2748 = vmatprep.subr.mxu0 0.0
    %2749 = vmatpush1.msra.mxu0 0.0
    %2750 = vmatprep.subr.mxu0 0.0
    %2751 = vmatpush1.msra.mxu0 0.0
    %2752 = vmatprep.subr.mxu0 0.0
    %2753 = vmatpush1.msra.mxu0 0.0
    %2754 = vmatprep.subr.mxu0 0.0
    %2755 = vmatpush1.msra.mxu0 0.0
    %2756 = vmatprep.subr.mxu0 0.0
    %2757 = vmatpush1.msra.mxu0 0.0
    %2758 = vmatprep.subr.mxu0 0.0
    %2759 = vmatpush1.msra.mxu0 0.0
    %2760 = vmatprep.subr.mxu0 0.0
    %2761 = vmatpush1.msra.mxu0 0.0
    %2762 = vmatprep.subr.mxu0 0.0
    %2763 = vmatpush1.msra.mxu0 0.0
    %2764 = vmatprep.subr.mxu0 0.0
    %2765 = vmatpush1.msra.mxu0 0.0
    %2766 = vmatprep.mubr.f32.mxu0 0.0
    %2767 = vmatmul.mubr.f32.gmra.mrb[0].mxu0 %v2691
    %v2768 = vpop.f32.mrb[0].mxu0
    %v2769 = vadd.f32 0.0, %v2768
    %v2770 = vpop.f32.mrb[0].mxu0
    %v2771 = vadd.f32 0.0, %v2770
    %2772 = vdwg.mxu0
    %2773 = vmatprep.subr.mxu0 0.0
    %2774 = vmatpush1.msra.mxu0 %v2700
    %2775 = vmatprep.subr.mxu0 0.0
    %2776 = vmatpush1.msra.mxu0 0.0
    %2777 = vmatprep.subr.mxu0 0.0
    %2778 = vmatpush1.msra.mxu0 0.0
    %2779 = vmatprep.subr.mxu0 0.0
    %2780 = vmatpush1.msra.mxu0 0.0
    %2781 = vmatprep.subr.mxu0 0.0
    %2782 = vmatpush1.msra.mxu0 0.0
    %2783 = vmatprep.subr.mxu0 0.0
    %2784 = vmatpush1.msra.mxu0 0.0
    %2785 = vmatprep.subr.mxu0 0.0
    %2786 = vmatpush1.msra.mxu0 0.0
    %2787 = vmatprep.subr.mxu0 0.0
    %2788 = vmatpush1.msra.mxu0 0.0
    %2789 = vmatprep.subr.mxu0 0.0
    %2790 = vmatpush1.msra.mxu0 0.0
    %2791 = vmatprep.subr.mxu0 0.0
    %2792 = vmatpush1.msra.mxu0 0.0
    %2793 = vmatprep.subr.mxu0 0.0
    %2794 = vmatpush1.msra.mxu0 0.0
    %2795 = vmatprep.subr.mxu0 0.0
    %2796 = vmatpush1.msra.mxu0 0.0
    %2797 = vmatprep.subr.mxu0 0.0
    %2798 = vmatpush1.msra.mxu0 0.0
    %2799 = vmatprep.subr.mxu0 0.0
    %2800 = vmatpush1.msra.mxu0 0.0
    %2801 = vmatprep.subr.mxu0 0.0
    %2802 = vmatpush1.msra.mxu0 0.0
    %2803 = vmatprep.subr.mxu0 0.0
    %2804 = vmatpush1.msra.mxu0 0.0
    %2805 = vmatprep.subr.mxu0 0.0
    %2806 = vmatpush1.msra.mxu0 0.0
    %2807 = vmatprep.subr.mxu0 0.0
    %2808 = vmatpush1.msra.mxu0 0.0
    %2809 = vmatprep.subr.mxu0 0.0
    %2810 = vmatpush1.msra.mxu0 0.0
    %2811 = vmatprep.subr.mxu0 0.0
    %2812 = vmatpush1.msra.mxu0 0.0
    %2813 = vmatprep.subr.mxu0 0.0
    %2814 = vmatpush1.msra.mxu0 0.0
    %2815 = vmatprep.subr.mxu0 0.0
    %2816 = vmatpush1.msra.mxu0 0.0
    %2817 = vmatprep.subr.mxu0 0.0
    %2818 = vmatpush1.msra.mxu0 0.0
    %2819 = vmatprep.subr.mxu0 0.0
    %2820 = vmatpush1.msra.mxu0 0.0
    %2821 = vmatprep.subr.mxu0 0.0
    %2822 = vmatpush1.msra.mxu0 0.0
    %2823 = vmatprep.subr.mxu0 0.0
    %2824 = vmatpush1.msra.mxu0 0.0
    %2825 = vmatprep.subr.mxu0 0.0
    %2826 = vmatpush1.msra.mxu0 0.0
    %2827 = vmatprep.subr.mxu0 0.0
    %2828 = vmatpush1.msra.mxu0 0.0
    %2829 = vmatprep.subr.mxu0 0.0
    %2830 = vmatpush1.msra.mxu0 0.0
    %2831 = vmatprep.subr.mxu0 0.0
    %2832 = vmatpush1.msra.mxu0 0.0
    %2833 = vmatprep.subr.mxu0 0.0
    %2834 = vmatpush1.msra.mxu0 0.0
    %2835 = vmatprep.subr.mxu0 0.0
    %2836 = vmatpush1.msra.mxu0 0.0
    %2837 = vmatprep.mubr.f32.mxu0 0.0
    %2838 = vmatmul.mubr.f32.gmra.mrb[0].mxu0 %v2691
    %v2839 = vpop.f32.mrb[0].mxu0
    %v2840 = vadd.f32 0.0, %v2839
    %v2841 = vpop.f32.mrb[0].mxu0
    %2842 = vdwg.mxu0
    %v2843 = vadd.f32 %v2677, %v2769
    %v2844 = vadd.f32 %v2678, %v2771
    %v2845 = vadd.f32 %v2679, %v2840
    %2846 = vrot.lane.b32.xlu0 %v1530, 90
    %v2847 = vpop.permute.xlu0 %2846
    %2848 = vrot.lane.b32.xlu0 %v1535, 90
    %v2849 = vpop.permute.xlu0 %2848
    %2850 = vrot.lane.b32.xlu0 %v1531, 90
    %v2851 = vpop.permute.xlu0 %2850
    %v2852 = vsel %vm1355, %v2849, %v2851
    %v2853 = vsel %vm1355, %v2847, %v2849
    %v2854 = vsel %vm1355, %v2851, %v2847
    %v2855 = vld [vmem:[%s1359] sm:$0xff]
    %v2857 = vsel %vm36, %v2855, 0
    %v2860 = vsel %vm40, %v2853, 0
    %v2863 = vsel %vm40, %v2852, 0
    %v2866 = vsel %vm40, %v2854, 0
    %2868 = vmatprep.subr.mxu0 %v2863
    %2869 = vmatpush1.msra.mxu0 %v2860
    %2870 = vmatprep.subr.mxu0 0.0
    %2871 = vmatpush1.msra.mxu0 0.0
    %2872 = vmatprep.subr.mxu0 0.0
    %2873 = vmatpush1.msra.mxu0 0.0
    %2874 = vmatprep.subr.mxu0 0.0
    %2875 = vmatpush1.msra.mxu0 0.0
    %2876 = vmatprep.subr.mxu0 0.0
    %2877 = vmatpush1.msra.mxu0 0.0
    %2878 = vmatprep.subr.mxu0 0.0
    %2879 = vmatpush1.msra.mxu0 0.0
    %2880 = vmatprep.subr.mxu0 0.0
    %2881 = vmatpush1.msra.mxu0 0.0
    %2882 = vmatprep.subr.mxu0 0.0
    %2883 = vmatpush1.msra.mxu0 0.0
    %2884 = vmatprep.subr.mxu0 0.0
    %2885 = vmatpush1.msra.mxu0 0.0
    %2886 = vmatprep.subr.mxu0 0.0
    %2887 = vmatpush1.msra.mxu0 0.0
    %2888 = vmatprep.subr.mxu0 0.0
    %2889 = vmatpush1.msra.mxu0 0.0
    %2890 = vmatprep.subr.mxu0 0.0
    %2891 = vmatpush1.msra.mxu0 0.0
    %2892 = vmatprep.subr.mxu0 0.0
    %2893 = vmatpush1.msra.mxu0 0.0
    %2894 = vmatprep.subr.mxu0 0.0
    %2895 = vmatpush1.msra.mxu0 0.0
    %2896 = vmatprep.subr.mxu0 0.0
    %2897 = vmatpush1.msra.mxu0 0.0
    %2898 = vmatprep.subr.mxu0 0.0
    %2899 = vmatpush1.msra.mxu0 0.0
    %2900 = vmatprep.subr.mxu0 0.0
    %2901 = vmatpush1.msra.mxu0 0.0
    %2902 = vmatprep.subr.mxu0 0.0
    %2903 = vmatpush1.msra.mxu0 0.0
    %2904 = vmatprep.subr.mxu0 0.0
    %2905 = vmatpush1.msra.mxu0 0.0
    %2906 = vmatprep.subr.mxu0 0.0
    %2907 = vmatpush1.msra.mxu0 0.0
    %2908 = vmatprep.subr.mxu0 0.0
    %2909 = vmatpush1.msra.mxu0 0.0
    %2910 = vmatprep.subr.mxu0 0.0
    %2911 = vmatpush1.msra.mxu0 0.0
    %2912 = vmatprep.subr.mxu0 0.0
    %2913 = vmatpush1.msra.mxu0 0.0
    %2914 = vmatprep.subr.mxu0 0.0
    %2915 = vmatpush1.msra.mxu0 0.0
    %2916 = vmatprep.subr.mxu0 0.0
    %2917 = vmatpush1.msra.mxu0 0.0
    %2918 = vmatprep.subr.mxu0 0.0
    %2919 = vmatpush1.msra.mxu0 0.0
    %2920 = vmatprep.subr.mxu0 0.0
    %2921 = vmatpush1.msra.mxu0 0.0
    %2922 = vmatprep.subr.mxu0 0.0
    %2923 = vmatpush1.msra.mxu0 0.0
    %2924 = vmatprep.subr.mxu0 0.0
    %2925 = vmatpush1.msra.mxu0 0.0
    %2926 = vmatprep.subr.mxu0 0.0
    %2927 = vmatpush1.msra.mxu0 0.0
    %2928 = vmatprep.subr.mxu0 0.0
    %2929 = vmatpush1.msra.mxu0 0.0
    %2930 = vmatprep.subr.mxu0 0.0
    %2931 = vmatpush1.msra.mxu0 0.0
    %2932 = vmatprep.mubr.f32.mxu0 0.0
    %2933 = vmatmul.mubr.f32.gmra.mrb[0].mxu0 %v2857
    %v2934 = vpop.f32.mrb[0].mxu0
    %v2935 = vadd.f32 0.0, %v2934
    %v2936 = vpop.f32.mrb[0].mxu0
    %v2937 = vadd.f32 0.0, %v2936
    %2938 = vdwg.mxu0
    %2939 = vmatprep.subr.mxu0 0.0
    %2940 = vmatpush1.msra.mxu0 %v2866
    %2941 = vmatprep.subr.mxu0 0.0
    %2942 = vmatpush1.msra.mxu0 0.0
    %2943 = vmatprep.subr.mxu0 0.0
    %2944 = vmatpush1.msra.mxu0 0.0
    %2945 = vmatprep.subr.mxu0 0.0
    %2946 = vmatpush1.msra.mxu0 0.0
    %2947 = vmatprep.subr.mxu0 0.0
    %2948 = vmatpush1.msra.mxu0 0.0
    %2949 = vmatprep.subr.mxu0 0.0
    %2950 = vmatpush1.msra.mxu0 0.0
    %2951 = vmatprep.subr.mxu0 0.0
    %2952 = vmatpush1.msra.mxu0 0.0
    %2953 = vmatprep.subr.mxu0 0.0
    %2954 = vmatpush1.msra.mxu0 0.0
    %2955 = vmatprep.subr.mxu0 0.0
    %2956 = vmatpush1.msra.mxu0 0.0
    %2957 = vmatprep.subr.mxu0 0.0
    %2958 = vmatpush1.msra.mxu0 0.0
    %2959 = vmatprep.subr.mxu0 0.0
    %2960 = vmatpush1.msra.mxu0 0.0
    %2961 = vmatprep.subr.mxu0 0.0
    %2962 = vmatpush1.msra.mxu0 0.0
    %2963 = vmatprep.subr.mxu0 0.0
    %2964 = vmatpush1.msra.mxu0 0.0
    %2965 = vmatprep.subr.mxu0 0.0
    %2966 = vmatpush1.msra.mxu0 0.0
    %2967 = vmatprep.subr.mxu0 0.0
    %2968 = vmatpush1.msra.mxu0 0.0
    %2969 = vmatprep.subr.mxu0 0.0
    %2970 = vmatpush1.msra.mxu0 0.0
    %2971 = vmatprep.subr.mxu0 0.0
    %2972 = vmatpush1.msra.mxu0 0.0
    %2973 = vmatprep.subr.mxu0 0.0
    %2974 = vmatpush1.msra.mxu0 0.0
    %2975 = vmatprep.subr.mxu0 0.0
    %2976 = vmatpush1.msra.mxu0 0.0
    %2977 = vmatprep.subr.mxu0 0.0
    %2978 = vmatpush1.msra.mxu0 0.0
    %2979 = vmatprep.subr.mxu0 0.0
    %2980 = vmatpush1.msra.mxu0 0.0
    %2981 = vmatprep.subr.mxu0 0.0
    %2982 = vmatpush1.msra.mxu0 0.0
    %2983 = vmatprep.subr.mxu0 0.0
    %2984 = vmatpush1.msra.mxu0 0.0
    %2985 = vmatprep.subr.mxu0 0.0
    %2986 = vmatpush1.msra.mxu0 0.0
    %2987 = vmatprep.subr.mxu0 0.0
    %2988 = vmatpush1.msra.mxu0 0.0
    %2989 = vmatprep.subr.mxu0 0.0
    %2990 = vmatpush1.msra.mxu0 0.0
    %2991 = vmatprep.subr.mxu0 0.0
    %2992 = vmatpush1.msra.mxu0 0.0
    %2993 = vmatprep.subr.mxu0 0.0
    %2994 = vmatpush1.msra.mxu0 0.0
    %2995 = vmatprep.subr.mxu0 0.0
    %2996 = vmatpush1.msra.mxu0 0.0
    %2997 = vmatprep.subr.mxu0 0.0
    %2998 = vmatpush1.msra.mxu0 0.0
    %2999 = vmatprep.subr.mxu0 0.0
    %3000 = vmatpush1.msra.mxu0 0.0
    %3001 = vmatprep.subr.mxu0 0.0
    %3002 = vmatpush1.msra.mxu0 0.0
    %3003 = vmatprep.mubr.f32.mxu0 0.0
    %3004 = vmatmul.mubr.f32.gmra.mrb[0].mxu0 %v2857
    %v3005 = vpop.f32.mrb[0].mxu0
    %v3006 = vadd.f32 0.0, %v3005
    %v3007 = vpop.f32.mrb[0].mxu0
    %3008 = vdwg.mxu0
    %v3009 = vadd.f32 %v2843, %v2935
    %v3010 = vadd.f32 %v2844, %v2937
    %v3011 = vadd.f32 %v2845, %v3006
    %v3012 = vld [vmem:[%s2] sm:$0xff]
    %3014 = vset.pattern.permute.xlu0 0
    %3015 = vperm.xlu0 %3014, %v3012
    %v3016 = vpop.permute.xlu0 %3015
    %v3018 = vadd.f32 %v3009, %v3016
    %v3019 = vadd.f32 %v3010, %v3016
    %v3020 = vadd.f32 %v3011, %v3016
    %s3021 = scalar_lea.vmem [#allocation2], 24
    %3022 = vst [vmem:[%s3021] sm:$0xff] %v3018
    %3023 = vst [vmem:[%s3021 + $0x8] sm:$0xff] %v3019
    %3024 = vst [vmem:[%s3021 + $0x10] sm:$0xff] %v3020
    // Predicated region
    $region14: #{tpu_custom_call.1} parent=1 // pred_check
      _
    $region15: #{tpu_custom_call.1} parent=1 // pred_check_branch
      %3026 = sbr.rel (0) target = $region17
    $region16: #{tpu_custom_call.1} parent=1 // pred_region
      %s3028 = ssub.s32 768, 768
      %3029 = vsyncadd [#allocation3], %s3028
      %s3030 = sshll.u32 [#allocation2], 4
      %s3031 = int_to_ptr.vmem [resolvable:$true] %s3030
      %3036 = dma.vmem_to_hbm [thread:$0]  %s3031, 768, %s3, [#allocation3], 384, 384, 24
    $region17: #{tpu_custom_call.1} parent=1 // pred_fallthru
      _
    // Predicated region
    $region18: #{tpu_custom_call.1} parent=1 // pred_check
      _
    $region19: #{tpu_custom_call.1} parent=1 // pred_check_branch
      %3038 = sbr.rel (0) target = $region21
    $region20: #{tpu_custom_call.1} parent=1 // pred_region
      %3039 = dma.done [#allocation3], 768
    $region21: #{tpu_custom_call.1} parent=1 // pred_fallthru
      _
    %3040 = vsyncpa [#allocation3], 1

</llo_original>
